<compile_context>
chip_gen: v6e
topology: v6e:2x2x1
jax: 0.10.0
libtpu: 0.0.40
codegen_flags: <defaults>
</compile_context>

<pallas_src>
import jax
import jax.numpy as jnp
from jax.experimental import pallas as pl
from jax.experimental.pallas import tpu as pltpu

H_IN, W_IN = 16, 16
C1_OUT = 32            # self.seq[0]: Conv2d(1, 32, 3, 1, bias=False)
C2_OUT = 64            # self.conv2d: Conv2d(32, 64, 3, 1, bias=False)
K = 3

H_MID, W_MID = H_IN - K + 1, W_IN - K + 1      # 14, 14
H_OUT, W_OUT = H_MID - K + 1, W_MID - K + 1    # 12, 12

# Tap offsets in the row-major (stride 16) flattened layout, t = kh*3 + kw.
TAP_OFFS = tuple(kh * W_IN + kw for kh in range(K) for kw in range(K))  # 0,1,2,16,...,34
N_TAPS = K * K          # 9
N_MXU_TAPS = 8          # taps 0..7 via the MXU dot; tap 8 (off=34) via one VPU FMA

IMG_STRIDE = H_IN * W_IN   # 256 lanes per image (valid taps never leave this slot)
LANE_PAD = 128             # slack so every shifted wide slice stays in-bounds
BT_MAX = 32                # images per grid step (VMEM ~17 MiB at 32)


def _conv2da_kernel(x_ref, w1_ref, w2_ref, o_ref, xw_ref, bm_ref):
    # x_ref : (1, 1, WX)      WX = W + 256; BT images at stride 256, zero-padded tail
    # w1_ref: (C1_OUT, 9)     conv1 weights, taps on lanes
    # w2_ref: (C2_OUT, 288)   conv2 weights, column (kh*3+kw)*32 + cin
    # o_ref : (1, C2_OUT, W)  W = BT*256 (lane-dense; per-image garbage lanes kept)
    # xw_ref: (8, WH)         conv1 im2col scratch, WH = W + 128
    # bm_ref: (288, W)        conv2 im2col scratch
    w_lanes = o_ref.shape[-1]
    wh_lanes = xw_ref.shape[-1]
    x_row = x_ref[0]                                        # (1, WX)

    # ---- conv1: 8 taps as one MXU dot over an exactly-8-row im2col + 1 VPU tap ----
    for t in range(N_MXU_TAPS):
        off = TAP_OFFS[t]
        xw_ref[t:t + 1, :] = x_row[:, off:off + wh_lanes]
    h = jnp.dot(w1_ref[:, :N_MXU_TAPS], xw_ref[...],
                preferred_element_type=jnp.float32)         # (32, WH)
    off8 = TAP_OFFS[N_MXU_TAPS]
    h = h + w1_ref[:, N_MXU_TAPS:] * x_row[:, off8:off8 + wh_lanes]

    # ---- conv2: build (288, W) im2col of h with sublane-aligned 32-row stores,
    # ---- then a single fused K=288 MXU matmul (accumulation stays inside the MXU).
    for t in range(N_TAPS):
        off = TAP_OFFS[t]
        bm_ref[t * C1_OUT:(t + 1) * C1_OUT, :] = h[:, off:off + w_lanes]
    o_ref[0] = jnp.dot(w2_ref[...], bm_ref[...],
                       preferred_element_type=jnp.float32).astype(o_ref.dtype)


def conv2da_forward(x, w1, w2, *, bt_max=BT_MAX):
    """x: (B, 1, 16, 16) f32 NCHW. w1: (32, 1, 3, 3), w2: (64, 32, 3, 3) (PyTorch OIHW)."""
    B = x.shape[0]
    assert B >= 1 and x.shape[1:] == (1, H_IN, W_IN), x.shape

    bt = min(bt_max, B)                 # images per grid step
    nsteps = pl.cdiv(B, bt)
    b_pad = nsteps * bt

    w_lanes = bt * IMG_STRIDE           # multiple of 128 for any bt
    wh_lanes = w_lanes + LANE_PAD
    wx_lanes = w_lanes + 2 * LANE_PAD

    # Lane-concatenate bt images per step at stride 256; zero-pad the tail so every
    # shifted wide slice stays in-bounds and garbage lanes stay finite.
    xf = x.reshape(B, IMG_STRIDE).astype(jnp.float32)
    if b_pad != B:
        xf = jnp.pad(xf, ((0, b_pad - B), (0, 0)))
    x_steps = xf.reshape(nsteps, 1, w_lanes)
    x_steps = jnp.pad(x_steps, ((0, 0), (0, 0), (0, wx_lanes - w_lanes)))

    # Wrapper-side weight layout plumbing (kernel never transposes).
    w1_k = w1.reshape(C1_OUT, N_TAPS).astype(jnp.float32)                      # (32, 9)
    w2_k = jnp.transpose(w2, (0, 2, 3, 1)).reshape(C2_OUT, N_TAPS * C1_OUT)    # (64, 288)
    w2_k = w2_k.astype(jnp.float32)

    raw = pl.pallas_call(
        _conv2da_kernel,
        out_shape=jax.ShapeDtypeStruct((nsteps, C2_OUT, w_lanes), jnp.float32),
        grid=(nsteps,),
        in_specs=[
            pl.BlockSpec((1, 1, wx_lanes), lambda s: (s, 0, 0)),               # per-step tile
            pl.BlockSpec((C1_OUT, N_TAPS), lambda s: (0, 0)),                  # VMEM-resident
            pl.BlockSpec((C2_OUT, N_TAPS * C1_OUT), lambda s: (0, 0)),         # VMEM-resident
        ],
        out_specs=pl.BlockSpec((1, C2_OUT, w_lanes), lambda s: (s, 0, 0)),
        scratch_shapes=[
            pltpu.VMEM((N_MXU_TAPS, wh_lanes), jnp.float32),                   # conv1 im2col
            pltpu.VMEM((N_TAPS * C1_OUT, w_lanes), jnp.float32),               # conv2 im2col
        ],
        compiler_params=pltpu.CompilerParams(
            dimension_semantics=("parallel",),
            vmem_limit_bytes=40 * 1024 * 1024,
        ),
    )(x_steps, w1_k, w2_k)

    # (nsteps, 64, bt*256) -> (B, 64, 12, 12): un-concatenate images, drop garbage lanes.
    out = raw.reshape(nsteps, C2_OUT, bt, H_IN, W_IN)
    out = jnp.transpose(out, (0, 2, 1, 3, 4)).reshape(b_pad, C2_OUT, H_IN, W_IN)
    return out[:B, :, :H_OUT, :W_OUT]


def _init_conv_params(key, out_c, in_c, k):
    # Deterministic init mirroring nn.Conv2d's default uniform(-1/sqrt(fan_in), 1/sqrt(fan_in)).
    bound = 1.0 / jnp.sqrt(jnp.float32(in_c * k * k))
    return jax.random.uniform(key, (out_c, in_c, k, k), jnp.float32, -bound, bound)


def _ref_forward(x, w1, w2):
    dn = ("NCHW", "OIHW", "NCHW")
    h = jax.lax.conv_general_dilated(x, w1, (1, 1), "VALID", dimension_numbers=dn,
                                     precision=jax.lax.Precision.HIGHEST)
    return jax.lax.conv_general_dilated(h, w2, (1, 1), "VALID", dimension_numbers=dn,
                                        precision=jax.lax.Precision.HIGHEST)


if __name__ == "__main__":
    key = jax.random.PRNGKey(0)
    kx, k1, k2 = jax.random.split(key, 3)

    batch = 2
    x = jax.random.normal(kx, (batch, 1, H_IN, W_IN), jnp.float32)
    w1 = _init_conv_params(k1, C1_OUT, 1, K)        # self.seq[0]
    w2 = _init_conv_params(k2, C2_OUT, C1_OUT, K)   # self.conv2d

    out = conv2da_forward(x, w1, w2)
    jax.block_until_ready(out)

    ref = _ref_forward(x, w1, w2)
    assert out.shape == (batch, C2_OUT, H_OUT, W_OUT), out.shape
    max_err = float(jnp.max(jnp.abs(out - ref)))
    assert jnp.allclose(out, ref, atol=5e-4, rtol=5e-4), max_err

    print("KERNEL_OK")
</pallas_src>

<mosaic_0001>
module attributes {stable_mosaic.version = 11 : i64} {
  func.func @_conv2da_kernel(%arg0: i32, %arg1: memref<1x1x768xf32, #tpu.memory_space<vmem>>, %arg2: memref<32x9xf32, #tpu.memory_space<vmem>>, %arg3: memref<64x288xf32, #tpu.memory_space<vmem>>, %arg4: memref<1x64x512xf32, #tpu.memory_space<vmem>>, %arg5: memref<8x640xf32, #tpu.memory_space<vmem>>, %arg6: memref<288x512xf32, #tpu.memory_space<vmem>>) attributes {dimension_semantics = [#tpu.dimension_semantics<parallel>], iteration_bounds = array<i64: 1>, scalar_prefetch = 0 : i64, scratch_operands = 2 : i64, tpu.core_type = #tpu.core_type<tc>, window_params = [{transform_indices = @transform_0, window_bounds = array<i64: 1, 1, 768>}, {pipeline_mode = #tpu.pipeline_mode<synchronous>, transform_indices = @transform_1, window_bounds = array<i64: 32, 9>}, {pipeline_mode = #tpu.pipeline_mode<synchronous>, transform_indices = @transform_2, window_bounds = array<i64: 64, 288>}, {transform_indices = @transform_3, window_bounds = array<i64: 1, 64, 512>}]} {
    %c0 = arith.constant 0 : index
    %c0_0 = arith.constant 0 : index
    %c0_1 = arith.constant 0 : index
    %0 = vector.load %arg1[%c0, %c0_0, %c0_1] : memref<1x1x768xf32, #tpu.memory_space<vmem>>, vector<1x1x768xf32>
    %1 = vector.shape_cast %0 : vector<1x1x768xf32> to vector<1x768xf32>
    %2 = vector.extract_strided_slice %1 {offsets = [0, 0], sizes = [1, 640], strides = [1, 1]} : vector<1x768xf32> to vector<1x640xf32>
    %c0_2 = arith.constant 0 : index
    %c0_3 = arith.constant 0 : index
    %3 = vector.load %arg5[%c0_2, %c0_3] : memref<8x640xf32, #tpu.memory_space<vmem>>, vector<1x640xf32>
    tpu.vector_store %arg5[%c0_2, %c0_3], %2 {strides = array<i32>} : memref<8x640xf32, #tpu.memory_space<vmem>>, vector<1x640xf32>,
    %4 = vector.extract_strided_slice %1 {offsets = [0, 1], sizes = [1, 640], strides = [1, 1]} : vector<1x768xf32> to vector<1x640xf32>
    %c1 = arith.constant 1 : index
    %c0_4 = arith.constant 0 : index
    %5 = vector.load %arg5[%c1, %c0_4] : memref<8x640xf32, #tpu.memory_space<vmem>>, vector<1x640xf32>
    tpu.vector_store %arg5[%c1, %c0_4], %4 {strides = array<i32>} : memref<8x640xf32, #tpu.memory_space<vmem>>, vector<1x640xf32>,
    %6 = vector.extract_strided_slice %1 {offsets = [0, 2], sizes = [1, 640], strides = [1, 1]} : vector<1x768xf32> to vector<1x640xf32>
    %c2 = arith.constant 2 : index
    %c0_5 = arith.constant 0 : index
    %7 = vector.load %arg5[%c2, %c0_5] : memref<8x640xf32, #tpu.memory_space<vmem>>, vector<1x640xf32>
    tpu.vector_store %arg5[%c2, %c0_5], %6 {strides = array<i32>} : memref<8x640xf32, #tpu.memory_space<vmem>>, vector<1x640xf32>,
    %8 = vector.extract_strided_slice %1 {offsets = [0, 16], sizes = [1, 640], strides = [1, 1]} : vector<1x768xf32> to vector<1x640xf32>
    %c3 = arith.constant 3 : index
    %c0_6 = arith.constant 0 : index
    %9 = vector.load %arg5[%c3, %c0_6] : memref<8x640xf32, #tpu.memory_space<vmem>>, vector<1x640xf32>
    tpu.vector_store %arg5[%c3, %c0_6], %8 {strides = array<i32>} : memref<8x640xf32, #tpu.memory_space<vmem>>, vector<1x640xf32>,
    %10 = vector.extract_strided_slice %1 {offsets = [0, 17], sizes = [1, 640], strides = [1, 1]} : vector<1x768xf32> to vector<1x640xf32>
    %c4 = arith.constant 4 : index
    %c0_7 = arith.constant 0 : index
    %11 = vector.load %arg5[%c4, %c0_7] : memref<8x640xf32, #tpu.memory_space<vmem>>, vector<1x640xf32>
    tpu.vector_store %arg5[%c4, %c0_7], %10 {strides = array<i32>} : memref<8x640xf32, #tpu.memory_space<vmem>>, vector<1x640xf32>,
    %12 = vector.extract_strided_slice %1 {offsets = [0, 18], sizes = [1, 640], strides = [1, 1]} : vector<1x768xf32> to vector<1x640xf32>
    %c5 = arith.constant 5 : index
    %c0_8 = arith.constant 0 : index
    %13 = vector.load %arg5[%c5, %c0_8] : memref<8x640xf32, #tpu.memory_space<vmem>>, vector<1x640xf32>
    tpu.vector_store %arg5[%c5, %c0_8], %12 {strides = array<i32>} : memref<8x640xf32, #tpu.memory_space<vmem>>, vector<1x640xf32>,
    %14 = vector.extract_strided_slice %1 {offsets = [0, 32], sizes = [1, 640], strides = [1, 1]} : vector<1x768xf32> to vector<1x640xf32>
    %c6 = arith.constant 6 : index
    %c0_9 = arith.constant 0 : index
    %15 = vector.load %arg5[%c6, %c0_9] : memref<8x640xf32, #tpu.memory_space<vmem>>, vector<1x640xf32>
    tpu.vector_store %arg5[%c6, %c0_9], %14 {strides = array<i32>} : memref<8x640xf32, #tpu.memory_space<vmem>>, vector<1x640xf32>,
    %16 = vector.extract_strided_slice %1 {offsets = [0, 33], sizes = [1, 640], strides = [1, 1]} : vector<1x768xf32> to vector<1x640xf32>
    %c7 = arith.constant 7 : index
    %c0_10 = arith.constant 0 : index
    %17 = vector.load %arg5[%c7, %c0_10] : memref<8x640xf32, #tpu.memory_space<vmem>>, vector<1x640xf32>
    tpu.vector_store %arg5[%c7, %c0_10], %16 {strides = array<i32>} : memref<8x640xf32, #tpu.memory_space<vmem>>, vector<1x640xf32>,
    %c0_11 = arith.constant 0 : index
    %c0_12 = arith.constant 0 : index
    %18 = vector.load %arg2[%c0_11, %c0_12] : memref<32x9xf32, #tpu.memory_space<vmem>>, vector<32x8xf32>
    %c0_13 = arith.constant 0 : index
    %c0_14 = arith.constant 0 : index
    %19 = vector.load %arg5[%c0_13, %c0_14] : memref<8x640xf32, #tpu.memory_space<vmem>>, vector<8x640xf32>
    %cst = arith.constant dense<0.000000e+00> : vector<32x640xf32>
    %20 = tpu.matmul %18, %19, %cst {dimension_numbers = #tpu.dot_dimension_numbers<[1], [0], [0], [1], [0, 0, 1, 1], [], []>} : vector<32x8xf32>, vector<8x640xf32>, vector<32x640xf32> -> vector<32x640xf32>
    %c0_15 = arith.constant 0 : index
    %c8 = arith.constant 8 : index
    %21 = vector.load %arg2[%c0_15, %c8] : memref<32x9xf32, #tpu.memory_space<vmem>>, vector<32x1xf32>
    %22 = vector.extract_strided_slice %1 {offsets = [0, 34], sizes = [1, 640], strides = [1, 1]} : vector<1x768xf32> to vector<1x640xf32>
    %23 = vector.broadcast %21 : vector<32x1xf32> to vector<32x640xf32>
    %24 = vector.broadcast %22 : vector<1x640xf32> to vector<32x640xf32>
    %25 = arith.mulf %23, %24 : vector<32x640xf32>
    %26 = arith.addf %20, %25 : vector<32x640xf32>
    %27 = vector.extract_strided_slice %26 {offsets = [0, 0], sizes = [32, 512], strides = [1, 1]} : vector<32x640xf32> to vector<32x512xf32>
    %c0_16 = arith.constant 0 : index
    %c0_17 = arith.constant 0 : index
    %28 = vector.load %arg6[%c0_16, %c0_17] : memref<288x512xf32, #tpu.memory_space<vmem>>, vector<32x512xf32>
    tpu.vector_store %arg6[%c0_16, %c0_17], %27 {strides = array<i32>} : memref<288x512xf32, #tpu.memory_space<vmem>>, vector<32x512xf32>,
    %29 = vector.extract_strided_slice %26 {offsets = [0, 1], sizes = [32, 512], strides = [1, 1]} : vector<32x640xf32> to vector<32x512xf32>
    %c32 = arith.constant 32 : index
    %c0_18 = arith.constant 0 : index
    %30 = vector.load %arg6[%c32, %c0_18] : memref<288x512xf32, #tpu.memory_space<vmem>>, vector<32x512xf32>
    tpu.vector_store %arg6[%c32, %c0_18], %29 {strides = array<i32>} : memref<288x512xf32, #tpu.memory_space<vmem>>, vector<32x512xf32>,
    %31 = vector.extract_strided_slice %26 {offsets = [0, 2], sizes = [32, 512], strides = [1, 1]} : vector<32x640xf32> to vector<32x512xf32>
    %c64 = arith.constant 64 : index
    %c0_19 = arith.constant 0 : index
    %32 = vector.load %arg6[%c64, %c0_19] : memref<288x512xf32, #tpu.memory_space<vmem>>, vector<32x512xf32>
    tpu.vector_store %arg6[%c64, %c0_19], %31 {strides = array<i32>} : memref<288x512xf32, #tpu.memory_space<vmem>>, vector<32x512xf32>,
    %33 = vector.extract_strided_slice %26 {offsets = [0, 16], sizes = [32, 512], strides = [1, 1]} : vector<32x640xf32> to vector<32x512xf32>
    %c96 = arith.constant 96 : index
    %c0_20 = arith.constant 0 : index
    %34 = vector.load %arg6[%c96, %c0_20] : memref<288x512xf32, #tpu.memory_space<vmem>>, vector<32x512xf32>
    tpu.vector_store %arg6[%c96, %c0_20], %33 {strides = array<i32>} : memref<288x512xf32, #tpu.memory_space<vmem>>, vector<32x512xf32>,
    %35 = vector.extract_strided_slice %26 {offsets = [0, 17], sizes = [32, 512], strides = [1, 1]} : vector<32x640xf32> to vector<32x512xf32>
    %c128 = arith.constant 128 : index
    %c0_21 = arith.constant 0 : index
    %36 = vector.load %arg6[%c128, %c0_21] : memref<288x512xf32, #tpu.memory_space<vmem>>, vector<32x512xf32>
    tpu.vector_store %arg6[%c128, %c0_21], %35 {strides = array<i32>} : memref<288x512xf32, #tpu.memory_space<vmem>>, vector<32x512xf32>,
    %37 = vector.extract_strided_slice %26 {offsets = [0, 18], sizes = [32, 512], strides = [1, 1]} : vector<32x640xf32> to vector<32x512xf32>
    %c160 = arith.constant 160 : index
    %c0_22 = arith.constant 0 : index
    %38 = vector.load %arg6[%c160, %c0_22] : memref<288x512xf32, #tpu.memory_space<vmem>>, vector<32x512xf32>
    tpu.vector_store %arg6[%c160, %c0_22], %37 {strides = array<i32>} : memref<288x512xf32, #tpu.memory_space<vmem>>, vector<32x512xf32>,
    %39 = vector.extract_strided_slice %26 {offsets = [0, 32], sizes = [32, 512], strides = [1, 1]} : vector<32x640xf32> to vector<32x512xf32>
    %c192 = arith.constant 192 : index
    %c0_23 = arith.constant 0 : index
    %40 = vector.load %arg6[%c192, %c0_23] : memref<288x512xf32, #tpu.memory_space<vmem>>, vector<32x512xf32>
    tpu.vector_store %arg6[%c192, %c0_23], %39 {strides = array<i32>} : memref<288x512xf32, #tpu.memory_space<vmem>>, vector<32x512xf32>,
    %41 = vector.extract_strided_slice %26 {offsets = [0, 33], sizes = [32, 512], strides = [1, 1]} : vector<32x640xf32> to vector<32x512xf32>
    %c224 = arith.constant 224 : index
    %c0_24 = arith.constant 0 : index
    %42 = vector.load %arg6[%c224, %c0_24] : memref<288x512xf32, #tpu.memory_space<vmem>>, vector<32x512xf32>
    tpu.vector_store %arg6[%c224, %c0_24], %41 {strides = array<i32>} : memref<288x512xf32, #tpu.memory_space<vmem>>, vector<32x512xf32>,
    %43 = vector.extract_strided_slice %26 {offsets = [0, 34], sizes = [32, 512], strides = [1, 1]} : vector<32x640xf32> to vector<32x512xf32>
    %c256 = arith.constant 256 : index
    %c0_25 = arith.constant 0 : index
    %44 = vector.load %arg6[%c256, %c0_25] : memref<288x512xf32, #tpu.memory_space<vmem>>, vector<32x512xf32>
    tpu.vector_store %arg6[%c256, %c0_25], %43 {strides = array<i32>} : memref<288x512xf32, #tpu.memory_space<vmem>>, vector<32x512xf32>,
    %c0_26 = arith.constant 0 : index
    %c0_27 = arith.constant 0 : index
    %45 = vector.load %arg3[%c0_26, %c0_27] : memref<64x288xf32, #tpu.memory_space<vmem>>, vector<64x288xf32>
    %c0_28 = arith.constant 0 : index
    %c0_29 = arith.constant 0 : index
    %46 = vector.load %arg6[%c0_28, %c0_29] : memref<288x512xf32, #tpu.memory_space<vmem>>, vector<288x512xf32>
    %cst_30 = arith.constant dense<0.000000e+00> : vector<64x512xf32>
    %47 = tpu.matmul %45, %46, %cst_30 {dimension_numbers = #tpu.dot_dimension_numbers<[1], [0], [0], [1], [0, 0, 1, 1], [], []>} : vector<64x288xf32>, vector<288x512xf32>, vector<64x512xf32> -> vector<64x512xf32>
    %c0_31 = arith.constant 0 : index
    %c0_32 = arith.constant 0 : index
    %c0_33 = arith.constant 0 : index
    %48 = vector.load %arg4[%c0_31, %c0_32, %c0_33] : memref<1x64x512xf32, #tpu.memory_space<vmem>>, vector<1x64x512xf32>
    %49 = vector.shape_cast %48 : vector<1x64x512xf32> to vector<64x512xf32>
    %50 = vector.shape_cast %47 : vector<64x512xf32> to vector<1x64x512xf32>
    tpu.vector_store %arg4[%c0_31, %c0_32, %c0_33], %50 {strides = array<i32>} : memref<1x64x512xf32, #tpu.memory_space<vmem>>, vector<1x64x512xf32>,
    return
  }
  func.func @transform_0(%arg0: i32) -> (i32, i32, i32) {
    %c0_i32 = arith.constant 0 : i32
    %c0_i32_0 = arith.constant 0 : i32
    %c0_i32_1 = arith.constant 0 : i32
    return %arg0, %c0_i32, %c0_i32_0 : i32, i32, i32
  }
  func.func @transform_1(%arg0: i32) -> (i32, i32) {
    %c0_i32 = arith.constant 0 : i32
    %c0_i32_0 = arith.constant 0 : i32
    %c0_i32_1 = arith.constant 0 : i32
    return %c0_i32, %c0_i32_0 : i32, i32
  }
  func.func @transform_2(%arg0: i32) -> (i32, i32) {
    %c0_i32 = arith.constant 0 : i32
    %c0_i32_0 = arith.constant 0 : i32
    %c0_i32_1 = arith.constant 0 : i32
    return %c0_i32, %c0_i32_0 : i32, i32
  }
  func.func @transform_3(%arg0: i32) -> (i32, i32, i32) {
    %c0_i32 = arith.constant 0 : i32
    %c0_i32_0 = arith.constant 0 : i32
    %c0_i32_1 = arith.constant 0 : i32
    return %arg0, %c0_i32, %c0_i32_0 : i32, i32, i32
  }
}

</mosaic_0001>

<llo_original>
// kernel: tpu_custom_call.1
$region0: #{tpu_custom_call.1}
  #allocation0 [shape = 'u32[]', space=smem, size = 0x4, offset = 0x4, fixed_abs, tag = 'smem constant byte address 0x4 - core index']
  #allocation1 [shape = 'u32[144,128]{1,0:T(1,128)}', space=vmem, size = 0x12000, scoped, tag = 'internal scratch']
  #allocation2 [shape = 'f32[8,640]{1,0:T(8,128)}', space=vmem, size = 0x5000, scoped, tag = 'scratch operand']
  #allocation3 [shape = 'f32[288,512]{1,0:T(8,128)}', space=vmem, size = 0x90000, scoped, tag = 'scratch operand']
  %s0 = inlined_call_operand.vmem [shape: f32[1,1,768], index: 0, kind: input, shape index: {}]
  %s1 = inlined_call_operand.vmem [shape: f32[32,9], index: 1, kind: input, shape index: {}]
  %s2 = inlined_call_operand.hbm [shape: f32[64,288], index: 2, kind: input, shape index: {}]
  %s3 = inlined_call_operand.hbm [shape: f32[1,64,512], index: 3, kind: output, shape index: {}]
  %s4 = sld [smem:[#allocation0]]
  $region26: #{tpu_custom_call.1} parent=0
    _
  %s6 = ssub.s32 1, %s4
  %s7 = scalar_select 0, %s6, %s4
  $region1: #{tpu_custom_call.1} parent=0
    #allocation4 [shape = 'u8[98304]{0}', space=vmem, size = 0x18000, scoped, tag = 'input window, operand 2, single buffered']
    #allocation5 [shape = 's32[1]{0}', space=sflag, size = 0x4, scoped, tag = 'scoped memory for tpu_custom_call.1']
    #allocation6 [shape = 's32[1]{0}', space=sflag, size = 0x4, scoped, tag = 'scoped memory for tpu_custom_call.1']
    #allocation7 [shape = 'u8[131072]{0}', space=vmem, size = 0x20000, scoped, tag = 'output window, operand 0, single buffered']
    %8 = vsyncpa [#allocation5], 0
    %9 = vsyncpa [#allocation6], 0
    // Predicated region
    $region2: #{tpu_custom_call.1} parent=1 // pred_check
      _
    $region3: #{tpu_custom_call.1} parent=1 // pred_check_branch
      %11 = sbr.rel (0) target = $region5
    $region4: #{tpu_custom_call.1} parent=1 // pred_region
      _
    $region5: #{tpu_custom_call.1} parent=1 // pred_fallthru
      _
    // Predicated region
    $region6: #{tpu_custom_call.1} parent=1 // pred_check
      _
    $region7: #{tpu_custom_call.1} parent=1 // pred_check_branch
      %13 = sbr.rel (0) target = $region9
    $region8: #{tpu_custom_call.1} parent=1 // pred_region
      _
    $region9: #{tpu_custom_call.1} parent=1 // pred_fallthru
      _
    // Predicated region
    $region10: #{tpu_custom_call.1} parent=1 // pred_check
      _
    $region11: #{tpu_custom_call.1} parent=1 // pred_check_branch
      %15 = sbr.rel (0) target = $region13
    $region12: #{tpu_custom_call.1} parent=1 // pred_region
      %s17 = ssub.s32 3072, 3072
      %18 = vsyncadd [#allocation5], %s17
      %s19 = sshll.u32 [#allocation4], 4
      %s20 = int_to_ptr.vmem [resolvable:$true] %s19
      %25 = dma.hbm_to_vmem [thread:$0]  %s2, 3072, %s20, [#allocation5], 384, 384, 24
    $region13: #{tpu_custom_call.1} parent=1 // pred_fallthru
      _
    // Predicated region
    $region14: #{tpu_custom_call.1} parent=1 // pred_check
      _
    $region15: #{tpu_custom_call.1} parent=1 // pred_check_branch
      %27 = sbr.rel (0) target = $region17
    $region16: #{tpu_custom_call.1} parent=1 // pred_region
      %28 = dma.done [#allocation5], 3072
    $region17: #{tpu_custom_call.1} parent=1 // pred_fallthru
      _
    %v29 = vld [vmem:[%s0] sm:$0x3f]
    %v30 = vlaneseq
    %vm31 = vcmp.ge.s32.totalorder %v30, 0
    %vm32 = vcmp.lt.s32.totalorder %v30, 640
    %vm33 = vmand %vm31, %vm32
    %34 = vst.msk [vmem:[#allocation2] ss:$8 sm:$0xf] %vm33, %v29
    %35 = vst.msk [vmem:[#allocation2] ss:$8 sm:$0x10] %vm33, %v29
    %37 = vrot.lane.b32.xlu0 %v29, 127
    %v38 = vpop.permute.xlu0 %37
    %v39 = vrot.slane %v38, 1
    %vm40 = vcmask 1039360
    %v41 = vsel %vm40, %v38, %v39
    %s43 = scalar_lea.vmem [#allocation2], 1
    %44 = vst.msk [vmem:[%s43] ss:$8 sm:$0xf] %vm33, %v41
    %45 = vst.msk [vmem:[%s43] ss:$8 sm:$0x10] %vm33, %v41
    %46 = vrot.lane.b32.xlu0 %v29, 126
    %v47 = vpop.permute.xlu0 %46
    %v48 = vrot.slane %v47, 1
    %vm49 = vcmask 1031168
    %v50 = vsel %vm49, %v47, %v48
    %s52 = scalar_lea.vmem [#allocation2], 2
    %53 = vst.msk [vmem:[%s52] ss:$8 sm:$0xf] %vm33, %v50
    %54 = vst.msk [vmem:[%s52] ss:$8 sm:$0x10] %vm33, %v50
    %55 = vrot.lane.b32.xlu0 %v29, 112
    %v56 = vpop.permute.xlu0 %55
    %v57 = vrot.slane %v56, 1
    %vm58 = vcmask 916480
    %v59 = vsel %vm58, %v56, %v57
    %s61 = scalar_lea.vmem [#allocation2], 3
    %62 = vst.msk [vmem:[%s61] ss:$8 sm:$0xf] %vm33, %v59
    %63 = vst.msk [vmem:[%s61] ss:$8 sm:$0x10] %vm33, %v59
    %64 = vrot.lane.b32.xlu0 %v29, 111
    %v65 = vpop.permute.xlu0 %64
    %v66 = vrot.slane %v65, 1
    %vm67 = vcmask 908288
    %v68 = vsel %vm67, %v65, %v66
    %s70 = scalar_lea.vmem [#allocation2], 4
    %71 = vst.msk [vmem:[%s70] ss:$8 sm:$0xf] %vm33, %v68
    %72 = vst.msk [vmem:[%s70] ss:$8 sm:$0x10] %vm33, %v68
    %73 = vrot.lane.b32.xlu0 %v29, 110
    %v74 = vpop.permute.xlu0 %73
    %v75 = vrot.slane %v74, 1
    %vm76 = vcmask 900096
    %v77 = vsel %vm76, %v74, %v75
    %s79 = scalar_lea.vmem [#allocation2], 5
    %80 = vst.msk [vmem:[%s79] ss:$8 sm:$0xf] %vm33, %v77
    %81 = vst.msk [vmem:[%s79] ss:$8 sm:$0x10] %vm33, %v77
    %82 = vrot.lane.b32.xlu0 %v29, 96
    %v83 = vpop.permute.xlu0 %82
    %v84 = vrot.slane %v83, 1
    %vm85 = vcmask 785408
    %v86 = vsel %vm85, %v83, %v84
    %s88 = scalar_lea.vmem [#allocation2], 6
    %89 = vst.msk [vmem:[%s88] ss:$8 sm:$0xf] %vm33, %v86
    %90 = vst.msk [vmem:[%s88] ss:$8 sm:$0x10] %vm33, %v86
    %91 = vrot.lane.b32.xlu0 %v29, 95
    %v92 = vpop.permute.xlu0 %91
    %v93 = vrot.slane %v92, 1
    %vm94 = vcmask 777216
    %v95 = vsel %vm94, %v92, %v93
    %s97 = scalar_lea.vmem [#allocation2], 7
    %98 = vst.msk [vmem:[%s97] ss:$8 sm:$0xf] %vm33, %v95
    %99 = vst.msk [vmem:[%s97] ss:$8 sm:$0x10] %vm33, %v95
    %v100 = vld [vmem:[%s1] sm:$0xff]
    %v101 = vld [vmem:[%s1 + $0x8] sm:$0xff]
    %v102 = vld [vmem:[%s1 + $0x10] sm:$0xff]
    %v103 = vld [vmem:[%s1 + $0x18] sm:$0xff]
    %v104 = vld [vmem:[#allocation2] sm:$0xff]
    %v105 = vld [vmem:[#allocation2 + $0x8] sm:$0xff]
    %v106 = vld [vmem:[#allocation2 + $0x10] sm:$0xff]
    %v107 = vld [vmem:[#allocation2 + $0x18] sm:$0xff]
    %v108 = vld [vmem:[#allocation2 + $0x20] sm:$0xff]
    %110 = vset.pattern.permute.xlu0 8
    %111 = vperm.xlu0 %110, %v100
    %v112 = vpop.permute.xlu0 %111
    %115 = vset.pattern.permute.xlu0 8
    %116 = vperm.xlu0 %115, %v101
    %v117 = vpop.permute.xlu0 %116
    %120 = vset.pattern.permute.xlu0 8
    %121 = vperm.xlu0 %120, %v102
    %v122 = vpop.permute.xlu0 %121
    %125 = vset.pattern.permute.xlu0 8
    %126 = vperm.xlu0 %125, %v103
    %v127 = vpop.permute.xlu0 %126
    %v129 = vlaneseq
    %v130 = vshrl.u32 %v129, 7
    %v131 = vsub.s32 0, %v130
    %v132 = vrot.slane %v29, %v131
    %v133 = vlaneseq
    %v134 = vshrl.u32 %v133, 7
    %v135 = vsub.s32 1, %v134
    %v136 = vrot.slane %v29, %v135
    %v137 = vlaneseq
    %v138 = vshrl.u32 %v137, 7
    %v139 = vsub.s32 2, %v138
    %v140 = vrot.slane %v29, %v139
    %v141 = vlaneseq
    %v142 = vshrl.u32 %v141, 7
    %v143 = vsub.s32 3, %v142
    %v144 = vrot.slane %v29, %v143
    %v145 = vlaneseq
    %v146 = vshrl.u32 %v145, 7
    %v147 = vsub.s32 4, %v146
    %v148 = vrot.slane %v29, %v147
    %v149 = vlaneseq
    %v150 = vshrl.u32 %v149, 7
    %v151 = vsub.s32 5, %v150
    %v152 = vrot.slane %v29, %v151
    %v159 = vmul.f32 %v112, %v132
    %v160 = vmul.f32 %v112, %v136
    %v161 = vmul.f32 %v112, %v140
    %v162 = vmul.f32 %v112, %v144
    %v163 = vmul.f32 %v112, %v148
    %v164 = vmul.f32 %v112, %v152
    %v165 = vmul.f32 %v117, %v132
    %v166 = vmul.f32 %v117, %v136
    %v167 = vmul.f32 %v117, %v140
    %v168 = vmul.f32 %v117, %v144
    %v169 = vmul.f32 %v117, %v148
    %v170 = vmul.f32 %v117, %v152
    %v171 = vmul.f32 %v122, %v132
    %v172 = vmul.f32 %v122, %v136
    %v173 = vmul.f32 %v122, %v140
    %v174 = vmul.f32 %v122, %v144
    %v175 = vmul.f32 %v122, %v148
    %v176 = vmul.f32 %v122, %v152
    %v177 = vmul.f32 %v127, %v132
    %v178 = vmul.f32 %v127, %v136
    %v179 = vmul.f32 %v127, %v140
    %v180 = vmul.f32 %v127, %v144
    %v181 = vmul.f32 %v127, %v148
    %v182 = vmul.f32 %v127, %v152
    %207 = vrot.lane.b32.xlu0 %v159, 94
    %v208 = vpop.permute.xlu0 %207
    %209 = vrot.lane.b32.xlu0 %v160, 94
    %v210 = vpop.permute.xlu0 %209
    %211 = vrot.lane.b32.xlu0 %v161, 94
    %v212 = vpop.permute.xlu0 %211
    %213 = vrot.lane.b32.xlu0 %v162, 94
    %v214 = vpop.permute.xlu0 %213
    %215 = vrot.lane.b32.xlu0 %v163, 94
    %v216 = vpop.permute.xlu0 %215
    %217 = vrot.lane.b32.xlu0 %v164, 94
    %v218 = vpop.permute.xlu0 %217
    %219 = vrot.lane.b32.xlu0 %v165, 94
    %v220 = vpop.permute.xlu0 %219
    %221 = vrot.lane.b32.xlu0 %v166, 94
    %v222 = vpop.permute.xlu0 %221
    %223 = vrot.lane.b32.xlu0 %v167, 94
    %v224 = vpop.permute.xlu0 %223
    %225 = vrot.lane.b32.xlu0 %v168, 94
    %v226 = vpop.permute.xlu0 %225
    %227 = vrot.lane.b32.xlu0 %v169, 94
    %v228 = vpop.permute.xlu0 %227
    %229 = vrot.lane.b32.xlu0 %v170, 94
    %v230 = vpop.permute.xlu0 %229
    %231 = vrot.lane.b32.xlu0 %v171, 94
    %v232 = vpop.permute.xlu0 %231
    %233 = vrot.lane.b32.xlu0 %v172, 94
    %v234 = vpop.permute.xlu0 %233
    %235 = vrot.lane.b32.xlu0 %v173, 94
    %v236 = vpop.permute.xlu0 %235
    %237 = vrot.lane.b32.xlu0 %v174, 94
    %v238 = vpop.permute.xlu0 %237
    %239 = vrot.lane.b32.xlu0 %v175, 94
    %v240 = vpop.permute.xlu0 %239
    %241 = vrot.lane.b32.xlu0 %v176, 94
    %v242 = vpop.permute.xlu0 %241
    %243 = vrot.lane.b32.xlu0 %v177, 94
    %v244 = vpop.permute.xlu0 %243
    %245 = vrot.lane.b32.xlu0 %v178, 94
    %v246 = vpop.permute.xlu0 %245
    %247 = vrot.lane.b32.xlu0 %v179, 94
    %v248 = vpop.permute.xlu0 %247
    %249 = vrot.lane.b32.xlu0 %v180, 94
    %v250 = vpop.permute.xlu0 %249
    %251 = vrot.lane.b32.xlu0 %v181, 94
    %v252 = vpop.permute.xlu0 %251
    %253 = vrot.lane.b32.xlu0 %v182, 94
    %v254 = vpop.permute.xlu0 %253
    %vm255 = vcmask 769024
    %v256 = vsel %vm255, %v208, %v210
    %v257 = vsel %vm255, %v210, %v212
    %v258 = vsel %vm255, %v212, %v214
    %v259 = vsel %vm255, %v214, %v216
    %v260 = vsel %vm255, %v216, %v218
    %v261 = vsel %vm255, %v220, %v222
    %v262 = vsel %vm255, %v222, %v224
    %v263 = vsel %vm255, %v224, %v226
    %v264 = vsel %vm255, %v226, %v228
    %v265 = vsel %vm255, %v228, %v230
    %v266 = vsel %vm255, %v232, %v234
    %v267 = vsel %vm255, %v234, %v236
    %v268 = vsel %vm255, %v236, %v238
    %v269 = vsel %vm255, %v238, %v240
    %v270 = vsel %vm255, %v240, %v242
    %v271 = vsel %vm255, %v244, %v246
    %v272 = vsel %vm255, %v246, %v248
    %v273 = vsel %vm255, %v248, %v250
    %v274 = vsel %vm255, %v250, %v252
    %v275 = vsel %vm255, %v252, %v254
    %vm296 = vcmask 64512
    %v297 = vsel %vm296, %v100, 0
    %v299 = vsel %vm296, %v101, 0
    %v301 = vsel %vm296, %v102, 0
    %v303 = vsel %vm296, %v103, 0
    %305 = vmatprep.subr.mxu0 0.0
    %306 = vmatpush1.msra.mxu0 0.0
    %307 = vmatprep.subr.mxu0 0.0
    %308 = vmatpush1.msra.mxu0 0.0
    %309 = vmatprep.subr.mxu0 0.0
    %310 = vmatpush1.msra.mxu0 0.0
    %311 = vmatprep.subr.mxu0 0.0
    %312 = vmatpush1.msra.mxu0 0.0
    %313 = vmatprep.subr.mxu0 0.0
    %314 = vmatpush1.msra.mxu0 0.0
    %315 = vmatprep.subr.mxu0 0.0
    %316 = vmatpush1.msra.mxu0 0.0
    %317 = vmatprep.subr.mxu0 0.0
    %318 = vmatpush1.msra.mxu0 0.0
    %319 = vmatprep.subr.mxu0 0.0
    %320 = vmatpush1.msra.mxu0 0.0
    %321 = vmatprep.subr.mxu0 0.0
    %322 = vmatpush1.msra.mxu0 0.0
    %323 = vmatprep.subr.mxu0 0.0
    %324 = vmatpush1.msra.mxu0 0.0
    %325 = vmatprep.subr.mxu0 0.0
    %326 = vmatpush1.msra.mxu0 0.0
    %327 = vmatprep.subr.mxu0 0.0
    %328 = vmatpush1.msra.mxu0 0.0
    %329 = vmatprep.subr.mxu0 0.0
    %330 = vmatpush1.msra.mxu0 0.0
    %331 = vmatprep.subr.mxu0 0.0
    %332 = vmatpush1.msra.mxu0 0.0
    %333 = vmatprep.subr.mxu0 0.0
    %334 = vmatpush1.msra.mxu0 0.0
    %335 = vmatprep.subr.mxu0 %v105
    %336 = vmatpush1.msra.mxu0 %v104
    %337 = vmatprep.subr.mxu0 0.0
    %338 = vmatpush2.msra.mxu0 0.0
    %339 = vmatprep.subr.mxu0 0.0
    %340 = vmatpush2.msra.mxu0 0.0
    %341 = vmatprep.subr.mxu0 0.0
    %342 = vmatpush2.msra.mxu0 0.0
    %343 = vmatprep.subr.mxu0 0.0
    %344 = vmatpush2.msra.mxu0 0.0
    %345 = vmatprep.subr.mxu0 0.0
    %346 = vmatpush2.msra.mxu0 0.0
    %347 = vmatprep.subr.mxu0 0.0
    %348 = vmatpush2.msra.mxu0 0.0
    %349 = vmatprep.subr.mxu0 0.0
    %350 = vmatpush2.msra.mxu0 0.0
    %351 = vmatprep.subr.mxu0 0.0
    %352 = vmatpush2.msra.mxu0 0.0
    %353 = vmatprep.subr.mxu0 0.0
    %354 = vmatpush2.msra.mxu0 0.0
    %355 = vmatprep.subr.mxu0 0.0
    %356 = vmatpush2.msra.mxu0 0.0
    %357 = vmatprep.subr.mxu0 0.0
    %358 = vmatpush2.msra.mxu0 0.0
    %359 = vmatprep.subr.mxu0 0.0
    %360 = vmatpush2.msra.mxu0 0.0
    %361 = vmatprep.subr.mxu0 0.0
    %362 = vmatpush2.msra.mxu0 0.0
    %363 = vmatprep.subr.mxu0 0.0
    %364 = vmatpush2.msra.mxu0 0.0
    %365 = vmatprep.subr.mxu0 0.0
    %366 = vmatpush2.msra.mxu0 0.0
    %367 = vmatprep.subr.mxu0 0.0
    %368 = vmatpush2.msra.mxu0 0.0
    %369 = vmatprep.mubr.f32.mxu0 0.0
    %370 = vmatmul.mubr.f32.gmra.mxu0 %v297
    %v371 = vpop.f32.mrf.mxu0
    %v372 = vadd.f32 %v256, %v371
    %v373 = vpop.f32.mrf.mxu0
    %v374 = vadd.f32 %v257, %v373
    %375 = vmatprep.mubr.f32.mxu0 0.0
    %376 = vmatmul.mubr.f32.gmra.mxu0 %v299
    %v377 = vpop.f32.mrf.mxu0
    %v378 = vadd.f32 %v261, %v377
    %v379 = vpop.f32.mrf.mxu0
    %v380 = vadd.f32 %v262, %v379
    %381 = vmatprep.mubr.f32.mxu0 0.0
    %382 = vmatmul.mubr.f32.gmra.mxu0 %v301
    %v383 = vpop.f32.mrf.mxu0
    %v384 = vadd.f32 %v266, %v383
    %v385 = vpop.f32.mrf.mxu0
    %v386 = vadd.f32 %v267, %v385
    %387 = vmatprep.mubr.f32.mxu0 0.0
    %388 = vmatmul.mubr.f32.gmra.mxu0 %v303
    %v389 = vpop.f32.mrf.mxu0
    %v390 = vadd.f32 %v271, %v389
    %v391 = vpop.f32.mrf.mxu0
    %v392 = vadd.f32 %v272, %v391
    %393 = vdwg.mxu0
    %394 = vmatprep.subr.mxu0 0.0
    %395 = vmatpush1.msra.mxu0 0.0
    %396 = vmatprep.subr.mxu0 0.0
    %397 = vmatpush1.msra.mxu0 0.0
    %398 = vmatprep.subr.mxu0 0.0
    %399 = vmatpush1.msra.mxu0 0.0
    %400 = vmatprep.subr.mxu0 0.0
    %401 = vmatpush1.msra.mxu0 0.0
    %402 = vmatprep.subr.mxu0 0.0
    %403 = vmatpush1.msra.mxu0 0.0
    %404 = vmatprep.subr.mxu0 0.0
    %405 = vmatpush1.msra.mxu0 0.0
    %406 = vmatprep.subr.mxu0 0.0
    %407 = vmatpush1.msra.mxu0 0.0
    %408 = vmatprep.subr.mxu0 0.0
    %409 = vmatpush1.msra.mxu0 0.0
    %410 = vmatprep.subr.mxu0 0.0
    %411 = vmatpush1.msra.mxu0 0.0
    %412 = vmatprep.subr.mxu0 0.0
    %413 = vmatpush1.msra.mxu0 0.0
    %414 = vmatprep.subr.mxu0 0.0
    %415 = vmatpush1.msra.mxu0 0.0
    %416 = vmatprep.subr.mxu0 0.0
    %417 = vmatpush1.msra.mxu0 0.0
    %418 = vmatprep.subr.mxu0 0.0
    %419 = vmatpush1.msra.mxu0 0.0
    %420 = vmatprep.subr.mxu0 0.0
    %421 = vmatpush1.msra.mxu0 0.0
    %422 = vmatprep.subr.mxu0 0.0
    %423 = vmatpush1.msra.mxu0 0.0
    %424 = vmatprep.subr.mxu0 %v107
    %425 = vmatpush1.msra.mxu0 %v106
    %426 = vmatprep.subr.mxu0 0.0
    %427 = vmatpush2.msra.mxu0 0.0
    %428 = vmatprep.subr.mxu0 0.0
    %429 = vmatpush2.msra.mxu0 0.0
    %430 = vmatprep.subr.mxu0 0.0
    %431 = vmatpush2.msra.mxu0 0.0
    %432 = vmatprep.subr.mxu0 0.0
    %433 = vmatpush2.msra.mxu0 0.0
    %434 = vmatprep.subr.mxu0 0.0
    %435 = vmatpush2.msra.mxu0 0.0
    %436 = vmatprep.subr.mxu0 0.0
    %437 = vmatpush2.msra.mxu0 0.0
    %438 = vmatprep.subr.mxu0 0.0
    %439 = vmatpush2.msra.mxu0 0.0
    %440 = vmatprep.subr.mxu0 0.0
    %441 = vmatpush2.msra.mxu0 0.0
    %442 = vmatprep.subr.mxu0 0.0
    %443 = vmatpush2.msra.mxu0 0.0
    %444 = vmatprep.subr.mxu0 0.0
    %445 = vmatpush2.msra.mxu0 0.0
    %446 = vmatprep.subr.mxu0 0.0
    %447 = vmatpush2.msra.mxu0 0.0
    %448 = vmatprep.subr.mxu0 0.0
    %449 = vmatpush2.msra.mxu0 0.0
    %450 = vmatprep.subr.mxu0 0.0
    %451 = vmatpush2.msra.mxu0 0.0
    %452 = vmatprep.subr.mxu0 0.0
    %453 = vmatpush2.msra.mxu0 0.0
    %454 = vmatprep.subr.mxu0 0.0
    %455 = vmatpush2.msra.mxu0 0.0
    %456 = vmatprep.subr.mxu0 0.0
    %457 = vmatpush2.msra.mxu0 0.0
    %458 = vmatprep.mubr.f32.mxu0 0.0
    %459 = vmatmul.mubr.f32.gmra.mxu0 %v297
    %v460 = vpop.f32.mrf.mxu0
    %v461 = vadd.f32 %v258, %v460
    %v462 = vpop.f32.mrf.mxu0
    %v463 = vadd.f32 %v259, %v462
    %464 = vmatprep.mubr.f32.mxu0 0.0
    %465 = vmatmul.mubr.f32.gmra.mxu0 %v299
    %v466 = vpop.f32.mrf.mxu0
    %v467 = vadd.f32 %v263, %v466
    %v468 = vpop.f32.mrf.mxu0
    %v469 = vadd.f32 %v264, %v468
    %470 = vmatprep.mubr.f32.mxu0 0.0
    %471 = vmatmul.mubr.f32.gmra.mxu0 %v301
    %v472 = vpop.f32.mrf.mxu0
    %v473 = vadd.f32 %v268, %v472
    %v474 = vpop.f32.mrf.mxu0
    %v475 = vadd.f32 %v269, %v474
    %476 = vmatprep.mubr.f32.mxu0 0.0
    %477 = vmatmul.mubr.f32.gmra.mxu0 %v303
    %v478 = vpop.f32.mrf.mxu0
    %v479 = vadd.f32 %v273, %v478
    %v480 = vpop.f32.mrf.mxu0
    %v481 = vadd.f32 %v274, %v480
    %482 = vdwg.mxu0
    %483 = vmatprep.subr.mxu0 0.0
    %484 = vmatpush1.msra.mxu0 0.0
    %485 = vmatprep.subr.mxu0 0.0
    %486 = vmatpush1.msra.mxu0 0.0
    %487 = vmatprep.subr.mxu0 0.0
    %488 = vmatpush1.msra.mxu0 0.0
    %489 = vmatprep.subr.mxu0 0.0
    %490 = vmatpush1.msra.mxu0 0.0
    %491 = vmatprep.subr.mxu0 0.0
    %492 = vmatpush1.msra.mxu0 0.0
    %493 = vmatprep.subr.mxu0 0.0
    %494 = vmatpush1.msra.mxu0 0.0
    %495 = vmatprep.subr.mxu0 0.0
    %496 = vmatpush1.msra.mxu0 0.0
    %497 = vmatprep.subr.mxu0 0.0
    %498 = vmatpush1.msra.mxu0 0.0
    %499 = vmatprep.subr.mxu0 0.0
    %500 = vmatpush1.msra.mxu0 0.0
    %501 = vmatprep.subr.mxu0 0.0
    %502 = vmatpush1.msra.mxu0 0.0
    %503 = vmatprep.subr.mxu0 0.0
    %504 = vmatpush1.msra.mxu0 0.0
    %505 = vmatprep.subr.mxu0 0.0
    %506 = vmatpush1.msra.mxu0 0.0
    %507 = vmatprep.subr.mxu0 0.0
    %508 = vmatpush1.msra.mxu0 0.0
    %509 = vmatprep.subr.mxu0 0.0
    %510 = vmatpush1.msra.mxu0 0.0
    %511 = vmatprep.subr.mxu0 0.0
    %512 = vmatpush1.msra.mxu0 0.0
    %513 = vmatprep.subr.mxu0 0.0
    %514 = vmatpush1.msra.mxu0 %v108
    %515 = vmatprep.subr.mxu0 0.0
    %516 = vmatpush2.msra.mxu0 0.0
    %517 = vmatprep.subr.mxu0 0.0
    %518 = vmatpush2.msra.mxu0 0.0
    %519 = vmatprep.subr.mxu0 0.0
    %520 = vmatpush2.msra.mxu0 0.0
    %521 = vmatprep.subr.mxu0 0.0
    %522 = vmatpush2.msra.mxu0 0.0
    %523 = vmatprep.subr.mxu0 0.0
    %524 = vmatpush2.msra.mxu0 0.0
    %525 = vmatprep.subr.mxu0 0.0
    %526 = vmatpush2.msra.mxu0 0.0
    %527 = vmatprep.subr.mxu0 0.0
    %528 = vmatpush2.msra.mxu0 0.0
    %529 = vmatprep.subr.mxu0 0.0
    %530 = vmatpush2.msra.mxu0 0.0
    %531 = vmatprep.subr.mxu0 0.0
    %532 = vmatpush2.msra.mxu0 0.0
    %533 = vmatprep.subr.mxu0 0.0
    %534 = vmatpush2.msra.mxu0 0.0
    %535 = vmatprep.subr.mxu0 0.0
    %536 = vmatpush2.msra.mxu0 0.0
    %537 = vmatprep.subr.mxu0 0.0
    %538 = vmatpush2.msra.mxu0 0.0
    %539 = vmatprep.subr.mxu0 0.0
    %540 = vmatpush2.msra.mxu0 0.0
    %541 = vmatprep.subr.mxu0 0.0
    %542 = vmatpush2.msra.mxu0 0.0
    %543 = vmatprep.subr.mxu0 0.0
    %544 = vmatpush2.msra.mxu0 0.0
    %545 = vmatprep.subr.mxu0 0.0
    %546 = vmatpush2.msra.mxu0 0.0
    %547 = vmatprep.mubr.f32.mxu0 0.0
    %548 = vmatmul.mubr.f32.gmra.mxu0 %v297
    %v549 = vpop.f32.mrf.mxu0
    %v550 = vadd.f32 %v260, %v549
    %v551 = vpop.f32.mrf.mxu0
    %552 = vmatprep.mubr.f32.mxu0 0.0
    %553 = vmatmul.mubr.f32.gmra.mxu0 %v299
    %v554 = vpop.f32.mrf.mxu0
    %v555 = vadd.f32 %v265, %v554
    %v556 = vpop.f32.mrf.mxu0
    %557 = vmatprep.mubr.f32.mxu0 0.0
    %558 = vmatmul.mubr.f32.gmra.mxu0 %v301
    %v559 = vpop.f32.mrf.mxu0
    %v560 = vadd.f32 %v270, %v559
    %v561 = vpop.f32.mrf.mxu0
    %562 = vmatprep.mubr.f32.mxu0 0.0
    %563 = vmatmul.mubr.f32.gmra.mxu0 %v303
    %v564 = vpop.f32.mrf.mxu0
    %v565 = vadd.f32 %v275, %v564
    %v566 = vpop.f32.mrf.mxu0
    %567 = vdwg.mxu0
    %568 = vst [vmem:[#allocation3] sm:$0xff] %v372
    %569 = vst [vmem:[#allocation3 + $0x8] sm:$0xff] %v374
    %570 = vst [vmem:[#allocation3 + $0x10] sm:$0xff] %v461
    %571 = vst [vmem:[#allocation3 + $0x18] sm:$0xff] %v463
    %572 = vst [vmem:[#allocation3 + $0x20] sm:$0xff] %v378
    %573 = vst [vmem:[#allocation3 + $0x28] sm:$0xff] %v380
    %574 = vst [vmem:[#allocation3 + $0x30] sm:$0xff] %v467
    %575 = vst [vmem:[#allocation3 + $0x38] sm:$0xff] %v469
    %576 = vst [vmem:[#allocation3 + $0x40] sm:$0xff] %v384
    %577 = vst [vmem:[#allocation3 + $0x48] sm:$0xff] %v386
    %578 = vst [vmem:[#allocation3 + $0x50] sm:$0xff] %v473
    %579 = vst [vmem:[#allocation3 + $0x58] sm:$0xff] %v475
    %580 = vst [vmem:[#allocation3 + $0x60] sm:$0xff] %v390
    %581 = vst [vmem:[#allocation3 + $0x68] sm:$0xff] %v392
    %582 = vst [vmem:[#allocation3 + $0x70] sm:$0xff] %v479
    %583 = vst [vmem:[#allocation3 + $0x78] sm:$0xff] %v481
    %604 = vrot.lane.b32.xlu0 %v372, 127
    %v605 = vpop.permute.xlu0 %604
    %606 = vrot.lane.b32.xlu0 %v374, 127
    %v607 = vpop.permute.xlu0 %606
    %608 = vrot.lane.b32.xlu0 %v461, 127
    %v609 = vpop.permute.xlu0 %608
    %610 = vrot.lane.b32.xlu0 %v463, 127
    %v611 = vpop.permute.xlu0 %610
    %612 = vrot.lane.b32.xlu0 %v550, 127
    %v613 = vpop.permute.xlu0 %612
    %614 = vrot.lane.b32.xlu0 %v378, 127
    %v615 = vpop.permute.xlu0 %614
    %616 = vrot.lane.b32.xlu0 %v380, 127
    %v617 = vpop.permute.xlu0 %616
    %618 = vrot.lane.b32.xlu0 %v467, 127
    %v619 = vpop.permute.xlu0 %618
    %620 = vrot.lane.b32.xlu0 %v469, 127
    %v621 = vpop.permute.xlu0 %620
    %622 = vrot.lane.b32.xlu0 %v555, 127
    %v623 = vpop.permute.xlu0 %622
    %624 = vrot.lane.b32.xlu0 %v384, 127
    %v625 = vpop.permute.xlu0 %624
    %626 = vrot.lane.b32.xlu0 %v386, 127
    %v627 = vpop.permute.xlu0 %626
    %628 = vrot.lane.b32.xlu0 %v473, 127
    %v629 = vpop.permute.xlu0 %628
    %630 = vrot.lane.b32.xlu0 %v475, 127
    %v631 = vpop.permute.xlu0 %630
    %632 = vrot.lane.b32.xlu0 %v560, 127
    %v633 = vpop.permute.xlu0 %632
    %634 = vrot.lane.b32.xlu0 %v390, 127
    %v635 = vpop.permute.xlu0 %634
    %636 = vrot.lane.b32.xlu0 %v392, 127
    %v637 = vpop.permute.xlu0 %636
    %638 = vrot.lane.b32.xlu0 %v479, 127
    %v639 = vpop.permute.xlu0 %638
    %640 = vrot.lane.b32.xlu0 %v481, 127
    %v641 = vpop.permute.xlu0 %640
    %642 = vrot.lane.b32.xlu0 %v565, 127
    %v643 = vpop.permute.xlu0 %642
    %v644 = vsel %vm40, %v605, %v607
    %v645 = vsel %vm40, %v607, %v609
    %v646 = vsel %vm40, %v609, %v611
    %v647 = vsel %vm40, %v611, %v613
    %v648 = vsel %vm40, %v615, %v617
    %v649 = vsel %vm40, %v617, %v619
    %v650 = vsel %vm40, %v619, %v621
    %v651 = vsel %vm40, %v621, %v623
    %v652 = vsel %vm40, %v625, %v627
    %v653 = vsel %vm40, %v627, %v629
    %v654 = vsel %vm40, %v629, %v631
    %v655 = vsel %vm40, %v631, %v633
    %v656 = vsel %vm40, %v635, %v637
    %v657 = vsel %vm40, %v637, %v639
    %v658 = vsel %vm40, %v639, %v641
    %v659 = vsel %vm40, %v641, %v643
    %676 = vst [vmem:[#allocation3 + $0x80] sm:$0xff] %v644
    %677 = vst [vmem:[#allocation3 + $0x88] sm:$0xff] %v645
    %678 = vst [vmem:[#allocation3 + $0x90] sm:$0xff] %v646
    %679 = vst [vmem:[#allocation3 + $0x98] sm:$0xff] %v647
    %680 = vst [vmem:[#allocation3 + $0xa0] sm:$0xff] %v648
    %681 = vst [vmem:[#allocation3 + $0xa8] sm:$0xff] %v649
    %682 = vst [vmem:[#allocation3 + $0xb0] sm:$0xff] %v650
    %683 = vst [vmem:[#allocation3 + $0xb8] sm:$0xff] %v651
    %684 = vst [vmem:[#allocation3 + $0xc0] sm:$0xff] %v652
    %685 = vst [vmem:[#allocation3 + $0xc8] sm:$0xff] %v653
    %686 = vst [vmem:[#allocation3 + $0xd0] sm:$0xff] %v654
    %687 = vst [vmem:[#allocation3 + $0xd8] sm:$0xff] %v655
    %688 = vst [vmem:[#allocation3 + $0xe0] sm:$0xff] %v656
    %689 = vst [vmem:[#allocation3 + $0xe8] sm:$0xff] %v657
    %690 = vst [vmem:[#allocation3 + $0xf0] sm:$0xff] %v658
    %691 = vst [vmem:[#allocation3 + $0xf8] sm:$0xff] %v659
    %692 = vrot.lane.b32.xlu0 %v372, 126
    %v693 = vpop.permute.xlu0 %692
    %694 = vrot.lane.b32.xlu0 %v374, 126
    %v695 = vpop.permute.xlu0 %694
    %696 = vrot.lane.b32.xlu0 %v461, 126
    %v697 = vpop.permute.xlu0 %696
    %698 = vrot.lane.b32.xlu0 %v463, 126
    %v699 = vpop.permute.xlu0 %698
    %700 = vrot.lane.b32.xlu0 %v550, 126
    %v701 = vpop.permute.xlu0 %700
    %702 = vrot.lane.b32.xlu0 %v378, 126
    %v703 = vpop.permute.xlu0 %702
    %704 = vrot.lane.b32.xlu0 %v380, 126
    %v705 = vpop.permute.xlu0 %704
    %706 = vrot.lane.b32.xlu0 %v467, 126
    %v707 = vpop.permute.xlu0 %706
    %708 = vrot.lane.b32.xlu0 %v469, 126
    %v709 = vpop.permute.xlu0 %708
    %710 = vrot.lane.b32.xlu0 %v555, 126
    %v711 = vpop.permute.xlu0 %710
    %712 = vrot.lane.b32.xlu0 %v384, 126
    %v713 = vpop.permute.xlu0 %712
    %714 = vrot.lane.b32.xlu0 %v386, 126
    %v715 = vpop.permute.xlu0 %714
    %716 = vrot.lane.b32.xlu0 %v473, 126
    %v717 = vpop.permute.xlu0 %716
    %718 = vrot.lane.b32.xlu0 %v475, 126
    %v719 = vpop.permute.xlu0 %718
    %720 = vrot.lane.b32.xlu0 %v560, 126
    %v721 = vpop.permute.xlu0 %720
    %722 = vrot.lane.b32.xlu0 %v390, 126
    %v723 = vpop.permute.xlu0 %722
    %724 = vrot.lane.b32.xlu0 %v392, 126
    %v725 = vpop.permute.xlu0 %724
    %726 = vrot.lane.b32.xlu0 %v479, 126
    %v727 = vpop.permute.xlu0 %726
    %728 = vrot.lane.b32.xlu0 %v481, 126
    %v729 = vpop.permute.xlu0 %728
    %730 = vrot.lane.b32.xlu0 %v565, 126
    %v731 = vpop.permute.xlu0 %730
    %v732 = vsel %vm49, %v693, %v695
    %v733 = vsel %vm49, %v695, %v697
    %v734 = vsel %vm49, %v697, %v699
    %v735 = vsel %vm49, %v699, %v701
    %v736 = vsel %vm49, %v703, %v705
    %v737 = vsel %vm49, %v705, %v707
    %v738 = vsel %vm49, %v707, %v709
    %v739 = vsel %vm49, %v709, %v711
    %v740 = vsel %vm49, %v713, %v715
    %v741 = vsel %vm49, %v715, %v717
    %v742 = vsel %vm49, %v717, %v719
    %v743 = vsel %vm49, %v719, %v721
    %v744 = vsel %vm49, %v723, %v725
    %v745 = vsel %vm49, %v725, %v727
    %v746 = vsel %vm49, %v727, %v729
    %v747 = vsel %vm49, %v729, %v731
    %764 = vst [vmem:[#allocation3 + $0x100] sm:$0xff] %v732
    %765 = vst [vmem:[#allocation3 + $0x108] sm:$0xff] %v733
    %766 = vst [vmem:[#allocation3 + $0x110] sm:$0xff] %v734
    %767 = vst [vmem:[#allocation3 + $0x118] sm:$0xff] %v735
    %768 = vst [vmem:[#allocation3 + $0x120] sm:$0xff] %v736
    %769 = vst [vmem:[#allocation3 + $0x128] sm:$0xff] %v737
    %770 = vst [vmem:[#allocation3 + $0x130] sm:$0xff] %v738
    %771 = vst [vmem:[#allocation3 + $0x138] sm:$0xff] %v739
    %772 = vst [vmem:[#allocation3 + $0x140] sm:$0xff] %v740
    %773 = vst [vmem:[#allocation3 + $0x148] sm:$0xff] %v741
    %774 = vst [vmem:[#allocation3 + $0x150] sm:$0xff] %v742
    %775 = vst [vmem:[#allocation3 + $0x158] sm:$0xff] %v743
    %776 = vst [vmem:[#allocation3 + $0x160] sm:$0xff] %v744
    %777 = vst [vmem:[#allocation3 + $0x168] sm:$0xff] %v745
    %778 = vst [vmem:[#allocation3 + $0x170] sm:$0xff] %v746
    %779 = vst [vmem:[#allocation3 + $0x178] sm:$0xff] %v747
    %780 = vrot.lane.b32.xlu0 %v372, 112
    %v781 = vpop.permute.xlu0 %780
    %782 = vrot.lane.b32.xlu0 %v374, 112
    %v783 = vpop.permute.xlu0 %782
    %784 = vrot.lane.b32.xlu0 %v461, 112
    %v785 = vpop.permute.xlu0 %784
    %786 = vrot.lane.b32.xlu0 %v463, 112
    %v787 = vpop.permute.xlu0 %786
    %788 = vrot.lane.b32.xlu0 %v550, 112
    %v789 = vpop.permute.xlu0 %788
    %790 = vrot.lane.b32.xlu0 %v378, 112
    %v791 = vpop.permute.xlu0 %790
    %792 = vrot.lane.b32.xlu0 %v380, 112
    %v793 = vpop.permute.xlu0 %792
    %794 = vrot.lane.b32.xlu0 %v467, 112
    %v795 = vpop.permute.xlu0 %794
    %796 = vrot.lane.b32.xlu0 %v469, 112
    %v797 = vpop.permute.xlu0 %796
    %798 = vrot.lane.b32.xlu0 %v555, 112
    %v799 = vpop.permute.xlu0 %798
    %800 = vrot.lane.b32.xlu0 %v384, 112
    %v801 = vpop.permute.xlu0 %800
    %802 = vrot.lane.b32.xlu0 %v386, 112
    %v803 = vpop.permute.xlu0 %802
    %804 = vrot.lane.b32.xlu0 %v473, 112
    %v805 = vpop.permute.xlu0 %804
    %806 = vrot.lane.b32.xlu0 %v475, 112
    %v807 = vpop.permute.xlu0 %806
    %808 = vrot.lane.b32.xlu0 %v560, 112
    %v809 = vpop.permute.xlu0 %808
    %810 = vrot.lane.b32.xlu0 %v390, 112
    %v811 = vpop.permute.xlu0 %810
    %812 = vrot.lane.b32.xlu0 %v392, 112
    %v813 = vpop.permute.xlu0 %812
    %814 = vrot.lane.b32.xlu0 %v479, 112
    %v815 = vpop.permute.xlu0 %814
    %816 = vrot.lane.b32.xlu0 %v481, 112
    %v817 = vpop.permute.xlu0 %816
    %818 = vrot.lane.b32.xlu0 %v565, 112
    %v819 = vpop.permute.xlu0 %818
    %v820 = vsel %vm58, %v781, %v783
    %v821 = vsel %vm58, %v783, %v785
    %v822 = vsel %vm58, %v785, %v787
    %v823 = vsel %vm58, %v787, %v789
    %v824 = vsel %vm58, %v791, %v793
    %v825 = vsel %vm58, %v793, %v795
    %v826 = vsel %vm58, %v795, %v797
    %v827 = vsel %vm58, %v797, %v799
    %v828 = vsel %vm58, %v801, %v803
    %v829 = vsel %vm58, %v803, %v805
    %v830 = vsel %vm58, %v805, %v807
    %v831 = vsel %vm58, %v807, %v809
    %v832 = vsel %vm58, %v811, %v813
    %v833 = vsel %vm58, %v813, %v815
    %v834 = vsel %vm58, %v815, %v817
    %v835 = vsel %vm58, %v817, %v819
    %852 = vst [vmem:[#allocation3 + $0x180] sm:$0xff] %v820
    %853 = vst [vmem:[#allocation3 + $0x188] sm:$0xff] %v821
    %854 = vst [vmem:[#allocation3 + $0x190] sm:$0xff] %v822
    %855 = vst [vmem:[#allocation3 + $0x198] sm:$0xff] %v823
    %856 = vst [vmem:[#allocation3 + $0x1a0] sm:$0xff] %v824
    %857 = vst [vmem:[#allocation3 + $0x1a8] sm:$0xff] %v825
    %858 = vst [vmem:[#allocation3 + $0x1b0] sm:$0xff] %v826
    %859 = vst [vmem:[#allocation3 + $0x1b8] sm:$0xff] %v827
    %860 = vst [vmem:[#allocation3 + $0x1c0] sm:$0xff] %v828
    %861 = vst [vmem:[#allocation3 + $0x1c8] sm:$0xff] %v829
    %862 = vst [vmem:[#allocation3 + $0x1d0] sm:$0xff] %v830
    %863 = vst [vmem:[#allocation3 + $0x1d8] sm:$0xff] %v831
    %864 = vst [vmem:[#allocation3 + $0x1e0] sm:$0xff] %v832
    %865 = vst [vmem:[#allocation3 + $0x1e8] sm:$0xff] %v833
    %866 = vst [vmem:[#allocation3 + $0x1f0] sm:$0xff] %v834
    %867 = vst [vmem:[#allocation3 + $0x1f8] sm:$0xff] %v835
    %868 = vrot.lane.b32.xlu0 %v372, 111
    %v869 = vpop.permute.xlu0 %868
    %870 = vrot.lane.b32.xlu0 %v374, 111
    %v871 = vpop.permute.xlu0 %870
    %872 = vrot.lane.b32.xlu0 %v461, 111
    %v873 = vpop.permute.xlu0 %872
    %874 = vrot.lane.b32.xlu0 %v463, 111
    %v875 = vpop.permute.xlu0 %874
    %876 = vrot.lane.b32.xlu0 %v550, 111
    %v877 = vpop.permute.xlu0 %876
    %878 = vrot.lane.b32.xlu0 %v378, 111
    %v879 = vpop.permute.xlu0 %878
    %880 = vrot.lane.b32.xlu0 %v380, 111
    %v881 = vpop.permute.xlu0 %880
    %882 = vrot.lane.b32.xlu0 %v467, 111
    %v883 = vpop.permute.xlu0 %882
    %884 = vrot.lane.b32.xlu0 %v469, 111
    %v885 = vpop.permute.xlu0 %884
    %886 = vrot.lane.b32.xlu0 %v555, 111
    %v887 = vpop.permute.xlu0 %886
    %888 = vrot.lane.b32.xlu0 %v384, 111
    %v889 = vpop.permute.xlu0 %888
    %890 = vrot.lane.b32.xlu0 %v386, 111
    %v891 = vpop.permute.xlu0 %890
    %892 = vrot.lane.b32.xlu0 %v473, 111
    %v893 = vpop.permute.xlu0 %892
    %894 = vrot.lane.b32.xlu0 %v475, 111
    %v895 = vpop.permute.xlu0 %894
    %896 = vrot.lane.b32.xlu0 %v560, 111
    %v897 = vpop.permute.xlu0 %896
    %898 = vrot.lane.b32.xlu0 %v390, 111
    %v899 = vpop.permute.xlu0 %898
    %900 = vrot.lane.b32.xlu0 %v392, 111
    %v901 = vpop.permute.xlu0 %900
    %902 = vrot.lane.b32.xlu0 %v479, 111
    %v903 = vpop.permute.xlu0 %902
    %904 = vrot.lane.b32.xlu0 %v481, 111
    %v905 = vpop.permute.xlu0 %904
    %906 = vrot.lane.b32.xlu0 %v565, 111
    %v907 = vpop.permute.xlu0 %906
    %v908 = vsel %vm67, %v869, %v871
    %v909 = vsel %vm67, %v871, %v873
    %v910 = vsel %vm67, %v873, %v875
    %v911 = vsel %vm67, %v875, %v877
    %v912 = vsel %vm67, %v879, %v881
    %v913 = vsel %vm67, %v881, %v883
    %v914 = vsel %vm67, %v883, %v885
    %v915 = vsel %vm67, %v885, %v887
    %v916 = vsel %vm67, %v889, %v891
    %v917 = vsel %vm67, %v891, %v893
    %v918 = vsel %vm67, %v893, %v895
    %v919 = vsel %vm67, %v895, %v897
    %v920 = vsel %vm67, %v899, %v901
    %v921 = vsel %vm67, %v901, %v903
    %v922 = vsel %vm67, %v903, %v905
    %v923 = vsel %vm67, %v905, %v907
    %940 = vst [vmem:[#allocation3 + $0x200] sm:$0xff] %v908
    %941 = vst [vmem:[#allocation3 + $0x208] sm:$0xff] %v909
    %942 = vst [vmem:[#allocation3 + $0x210] sm:$0xff] %v910
    %943 = vst [vmem:[#allocation3 + $0x218] sm:$0xff] %v911
    %944 = vst [vmem:[#allocation3 + $0x220] sm:$0xff] %v912
    %945 = vst [vmem:[#allocation3 + $0x228] sm:$0xff] %v913
    %946 = vst [vmem:[#allocation3 + $0x230] sm:$0xff] %v914
    %947 = vst [vmem:[#allocation3 + $0x238] sm:$0xff] %v915
    %948 = vst [vmem:[#allocation3 + $0x240] sm:$0xff] %v916
    %949 = vst [vmem:[#allocation3 + $0x248] sm:$0xff] %v917
    %950 = vst [vmem:[#allocation3 + $0x250] sm:$0xff] %v918
    %951 = vst [vmem:[#allocation3 + $0x258] sm:$0xff] %v919
    %952 = vst [vmem:[#allocation3 + $0x260] sm:$0xff] %v920
    %953 = vst [vmem:[#allocation3 + $0x268] sm:$0xff] %v921
    %954 = vst [vmem:[#allocation3 + $0x270] sm:$0xff] %v922
    %955 = vst [vmem:[#allocation3 + $0x278] sm:$0xff] %v923
    %956 = vrot.lane.b32.xlu0 %v372, 110
    %v957 = vpop.permute.xlu0 %956
    %958 = vrot.lane.b32.xlu0 %v374, 110
    %v959 = vpop.permute.xlu0 %958
    %960 = vrot.lane.b32.xlu0 %v461, 110
    %v961 = vpop.permute.xlu0 %960
    %962 = vrot.lane.b32.xlu0 %v463, 110
    %v963 = vpop.permute.xlu0 %962
    %964 = vrot.lane.b32.xlu0 %v550, 110
    %v965 = vpop.permute.xlu0 %964
    %966 = vrot.lane.b32.xlu0 %v378, 110
    %v967 = vpop.permute.xlu0 %966
    %968 = vrot.lane.b32.xlu0 %v380, 110
    %v969 = vpop.permute.xlu0 %968
    %970 = vrot.lane.b32.xlu0 %v467, 110
    %v971 = vpop.permute.xlu0 %970
    %972 = vrot.lane.b32.xlu0 %v469, 110
    %v973 = vpop.permute.xlu0 %972
    %974 = vrot.lane.b32.xlu0 %v555, 110
    %v975 = vpop.permute.xlu0 %974
    %976 = vrot.lane.b32.xlu0 %v384, 110
    %v977 = vpop.permute.xlu0 %976
    %978 = vrot.lane.b32.xlu0 %v386, 110
    %v979 = vpop.permute.xlu0 %978
    %980 = vrot.lane.b32.xlu0 %v473, 110
    %v981 = vpop.permute.xlu0 %980
    %982 = vrot.lane.b32.xlu0 %v475, 110
    %v983 = vpop.permute.xlu0 %982
    %984 = vrot.lane.b32.xlu0 %v560, 110
    %v985 = vpop.permute.xlu0 %984
    %986 = vrot.lane.b32.xlu0 %v390, 110
    %v987 = vpop.permute.xlu0 %986
    %988 = vrot.lane.b32.xlu0 %v392, 110
    %v989 = vpop.permute.xlu0 %988
    %990 = vrot.lane.b32.xlu0 %v479, 110
    %v991 = vpop.permute.xlu0 %990
    %992 = vrot.lane.b32.xlu0 %v481, 110
    %v993 = vpop.permute.xlu0 %992
    %994 = vrot.lane.b32.xlu0 %v565, 110
    %v995 = vpop.permute.xlu0 %994
    %v996 = vsel %vm76, %v957, %v959
    %v997 = vsel %vm76, %v959, %v961
    %v998 = vsel %vm76, %v961, %v963
    %v999 = vsel %vm76, %v963, %v965
    %v1000 = vsel %vm76, %v967, %v969
    %v1001 = vsel %vm76, %v969, %v971
    %v1002 = vsel %vm76, %v971, %v973
    %v1003 = vsel %vm76, %v973, %v975
    %v1004 = vsel %vm76, %v977, %v979
    %v1005 = vsel %vm76, %v979, %v981
    %v1006 = vsel %vm76, %v981, %v983
    %v1007 = vsel %vm76, %v983, %v985
    %v1008 = vsel %vm76, %v987, %v989
    %v1009 = vsel %vm76, %v989, %v991
    %v1010 = vsel %vm76, %v991, %v993
    %v1011 = vsel %vm76, %v993, %v995
    %1028 = vst [vmem:[#allocation3 + $0x280] sm:$0xff] %v996
    %1029 = vst [vmem:[#allocation3 + $0x288] sm:$0xff] %v997
    %1030 = vst [vmem:[#allocation3 + $0x290] sm:$0xff] %v998
    %1031 = vst [vmem:[#allocation3 + $0x298] sm:$0xff] %v999
    %1032 = vst [vmem:[#allocation3 + $0x2a0] sm:$0xff] %v1000
    %1033 = vst [vmem:[#allocation3 + $0x2a8] sm:$0xff] %v1001
    %1034 = vst [vmem:[#allocation3 + $0x2b0] sm:$0xff] %v1002
    %1035 = vst [vmem:[#allocation3 + $0x2b8] sm:$0xff] %v1003
    %1036 = vst [vmem:[#allocation3 + $0x2c0] sm:$0xff] %v1004
    %1037 = vst [vmem:[#allocation3 + $0x2c8] sm:$0xff] %v1005
    %1038 = vst [vmem:[#allocation3 + $0x2d0] sm:$0xff] %v1006
    %1039 = vst [vmem:[#allocation3 + $0x2d8] sm:$0xff] %v1007
    %1040 = vst [vmem:[#allocation3 + $0x2e0] sm:$0xff] %v1008
    %1041 = vst [vmem:[#allocation3 + $0x2e8] sm:$0xff] %v1009
    %1042 = vst [vmem:[#allocation3 + $0x2f0] sm:$0xff] %v1010
    %1043 = vst [vmem:[#allocation3 + $0x2f8] sm:$0xff] %v1011
    %1044 = vrot.lane.b32.xlu0 %v372, 96
    %v1045 = vpop.permute.xlu0 %1044
    %1046 = vrot.lane.b32.xlu0 %v374, 96
    %v1047 = vpop.permute.xlu0 %1046
    %1048 = vrot.lane.b32.xlu0 %v461, 96
    %v1049 = vpop.permute.xlu0 %1048
    %1050 = vrot.lane.b32.xlu0 %v463, 96
    %v1051 = vpop.permute.xlu0 %1050
    %1052 = vrot.lane.b32.xlu0 %v550, 96
    %v1053 = vpop.permute.xlu0 %1052
    %1054 = vrot.lane.b32.xlu0 %v378, 96
    %v1055 = vpop.permute.xlu0 %1054
    %1056 = vrot.lane.b32.xlu0 %v380, 96
    %v1057 = vpop.permute.xlu0 %1056
    %1058 = vrot.lane.b32.xlu0 %v467, 96
    %v1059 = vpop.permute.xlu0 %1058
    %1060 = vrot.lane.b32.xlu0 %v469, 96
    %v1061 = vpop.permute.xlu0 %1060
    %1062 = vrot.lane.b32.xlu0 %v555, 96
    %v1063 = vpop.permute.xlu0 %1062
    %1064 = vrot.lane.b32.xlu0 %v384, 96
    %v1065 = vpop.permute.xlu0 %1064
    %1066 = vrot.lane.b32.xlu0 %v386, 96
    %v1067 = vpop.permute.xlu0 %1066
    %1068 = vrot.lane.b32.xlu0 %v473, 96
    %v1069 = vpop.permute.xlu0 %1068
    %1070 = vrot.lane.b32.xlu0 %v475, 96
    %v1071 = vpop.permute.xlu0 %1070
    %1072 = vrot.lane.b32.xlu0 %v560, 96
    %v1073 = vpop.permute.xlu0 %1072
    %1074 = vrot.lane.b32.xlu0 %v390, 96
    %v1075 = vpop.permute.xlu0 %1074
    %1076 = vrot.lane.b32.xlu0 %v392, 96
    %v1077 = vpop.permute.xlu0 %1076
    %1078 = vrot.lane.b32.xlu0 %v479, 96
    %v1079 = vpop.permute.xlu0 %1078
    %1080 = vrot.lane.b32.xlu0 %v481, 96
    %v1081 = vpop.permute.xlu0 %1080
    %1082 = vrot.lane.b32.xlu0 %v565, 96
    %v1083 = vpop.permute.xlu0 %1082
    %v1084 = vsel %vm85, %v1045, %v1047
    %v1085 = vsel %vm85, %v1047, %v1049
    %v1086 = vsel %vm85, %v1049, %v1051
    %v1087 = vsel %vm85, %v1051, %v1053
    %v1088 = vsel %vm85, %v1055, %v1057
    %v1089 = vsel %vm85, %v1057, %v1059
    %v1090 = vsel %vm85, %v1059, %v1061
    %v1091 = vsel %vm85, %v1061, %v1063
    %v1092 = vsel %vm85, %v1065, %v1067
    %v1093 = vsel %vm85, %v1067, %v1069
    %v1094 = vsel %vm85, %v1069, %v1071
    %v1095 = vsel %vm85, %v1071, %v1073
    %v1096 = vsel %vm85, %v1075, %v1077
    %v1097 = vsel %vm85, %v1077, %v1079
    %v1098 = vsel %vm85, %v1079, %v1081
    %v1099 = vsel %vm85, %v1081, %v1083
    %1116 = vst [vmem:[#allocation3 + $0x300] sm:$0xff] %v1084
    %1117 = vst [vmem:[#allocation3 + $0x308] sm:$0xff] %v1085
    %1118 = vst [vmem:[#allocation3 + $0x310] sm:$0xff] %v1086
    %1119 = vst [vmem:[#allocation3 + $0x318] sm:$0xff] %v1087
    %1120 = vst [vmem:[#allocation3 + $0x320] sm:$0xff] %v1088
    %1121 = vst [vmem:[#allocation3 + $0x328] sm:$0xff] %v1089
    %1122 = vst [vmem:[#allocation3 + $0x330] sm:$0xff] %v1090
    %1123 = vst [vmem:[#allocation3 + $0x338] sm:$0xff] %v1091
    %1124 = vst [vmem:[#allocation3 + $0x340] sm:$0xff] %v1092
    %1125 = vst [vmem:[#allocation3 + $0x348] sm:$0xff] %v1093
    %1126 = vst [vmem:[#allocation3 + $0x350] sm:$0xff] %v1094
    %1127 = vst [vmem:[#allocation3 + $0x358] sm:$0xff] %v1095
    %1128 = vst [vmem:[#allocation3 + $0x360] sm:$0xff] %v1096
    %1129 = vst [vmem:[#allocation3 + $0x368] sm:$0xff] %v1097
    %1130 = vst [vmem:[#allocation3 + $0x370] sm:$0xff] %v1098
    %1131 = vst [vmem:[#allocation3 + $0x378] sm:$0xff] %v1099
    %1132 = vrot.lane.b32.xlu0 %v372, 95
    %v1133 = vpop.permute.xlu0 %1132
    %1134 = vrot.lane.b32.xlu0 %v374, 95
    %v1135 = vpop.permute.xlu0 %1134
    %1136 = vrot.lane.b32.xlu0 %v461, 95
    %v1137 = vpop.permute.xlu0 %1136
    %1138 = vrot.lane.b32.xlu0 %v463, 95
    %v1139 = vpop.permute.xlu0 %1138
    %1140 = vrot.lane.b32.xlu0 %v550, 95
    %v1141 = vpop.permute.xlu0 %1140
    %1142 = vrot.lane.b32.xlu0 %v378, 95
    %v1143 = vpop.permute.xlu0 %1142
    %1144 = vrot.lane.b32.xlu0 %v380, 95
    %v1145 = vpop.permute.xlu0 %1144
    %1146 = vrot.lane.b32.xlu0 %v467, 95
    %v1147 = vpop.permute.xlu0 %1146
    %1148 = vrot.lane.b32.xlu0 %v469, 95
    %v1149 = vpop.permute.xlu0 %1148
    %1150 = vrot.lane.b32.xlu0 %v555, 95
    %v1151 = vpop.permute.xlu0 %1150
    %1152 = vrot.lane.b32.xlu0 %v384, 95
    %v1153 = vpop.permute.xlu0 %1152
    %1154 = vrot.lane.b32.xlu0 %v386, 95
    %v1155 = vpop.permute.xlu0 %1154
    %1156 = vrot.lane.b32.xlu0 %v473, 95
    %v1157 = vpop.permute.xlu0 %1156
    %1158 = vrot.lane.b32.xlu0 %v475, 95
    %v1159 = vpop.permute.xlu0 %1158
    %1160 = vrot.lane.b32.xlu0 %v560, 95
    %v1161 = vpop.permute.xlu0 %1160
    %1162 = vrot.lane.b32.xlu0 %v390, 95
    %v1163 = vpop.permute.xlu0 %1162
    %1164 = vrot.lane.b32.xlu0 %v392, 95
    %v1165 = vpop.permute.xlu0 %1164
    %1166 = vrot.lane.b32.xlu0 %v479, 95
    %v1167 = vpop.permute.xlu0 %1166
    %1168 = vrot.lane.b32.xlu0 %v481, 95
    %v1169 = vpop.permute.xlu0 %1168
    %1170 = vrot.lane.b32.xlu0 %v565, 95
    %v1171 = vpop.permute.xlu0 %1170
    %v1172 = vsel %vm94, %v1133, %v1135
    %v1173 = vsel %vm94, %v1135, %v1137
    %v1174 = vsel %vm94, %v1137, %v1139
    %v1175 = vsel %vm94, %v1139, %v1141
    %v1176 = vsel %vm94, %v1143, %v1145
    %v1177 = vsel %vm94, %v1145, %v1147
    %v1178 = vsel %vm94, %v1147, %v1149
    %v1179 = vsel %vm94, %v1149, %v1151
    %v1180 = vsel %vm94, %v1153, %v1155
    %v1181 = vsel %vm94, %v1155, %v1157
    %v1182 = vsel %vm94, %v1157, %v1159
    %v1183 = vsel %vm94, %v1159, %v1161
    %v1184 = vsel %vm94, %v1163, %v1165
    %v1185 = vsel %vm94, %v1165, %v1167
    %v1186 = vsel %vm94, %v1167, %v1169
    %v1187 = vsel %vm94, %v1169, %v1171
    %1204 = vst [vmem:[#allocation3 + $0x380] sm:$0xff] %v1172
    %1205 = vst [vmem:[#allocation3 + $0x388] sm:$0xff] %v1173
    %1206 = vst [vmem:[#allocation3 + $0x390] sm:$0xff] %v1174
    %1207 = vst [vmem:[#allocation3 + $0x398] sm:$0xff] %v1175
    %1208 = vst [vmem:[#allocation3 + $0x3a0] sm:$0xff] %v1176
    %1209 = vst [vmem:[#allocation3 + $0x3a8] sm:$0xff] %v1177
    %1210 = vst [vmem:[#allocation3 + $0x3b0] sm:$0xff] %v1178
    %1211 = vst [vmem:[#allocation3 + $0x3b8] sm:$0xff] %v1179
    %1212 = vst [vmem:[#allocation3 + $0x3c0] sm:$0xff] %v1180
    %1213 = vst [vmem:[#allocation3 + $0x3c8] sm:$0xff] %v1181
    %1214 = vst [vmem:[#allocation3 + $0x3d0] sm:$0xff] %v1182
    %1215 = vst [vmem:[#allocation3 + $0x3d8] sm:$0xff] %v1183
    %1216 = vst [vmem:[#allocation3 + $0x3e0] sm:$0xff] %v1184
    %1217 = vst [vmem:[#allocation3 + $0x3e8] sm:$0xff] %v1185
    %1218 = vst [vmem:[#allocation3 + $0x3f0] sm:$0xff] %v1186
    %1219 = vst [vmem:[#allocation3 + $0x3f8] sm:$0xff] %v1187
    %1220 = vrot.lane.b32.xlu0 %v372, 94
    %v1221 = vpop.permute.xlu0 %1220
    %1222 = vrot.lane.b32.xlu0 %v374, 94
    %v1223 = vpop.permute.xlu0 %1222
    %1224 = vrot.lane.b32.xlu0 %v461, 94
    %v1225 = vpop.permute.xlu0 %1224
    %1226 = vrot.lane.b32.xlu0 %v463, 94
    %v1227 = vpop.permute.xlu0 %1226
    %1228 = vrot.lane.b32.xlu0 %v550, 94
    %v1229 = vpop.permute.xlu0 %1228
    %1230 = vrot.lane.b32.xlu0 %v378, 94
    %v1231 = vpop.permute.xlu0 %1230
    %1232 = vrot.lane.b32.xlu0 %v380, 94
    %v1233 = vpop.permute.xlu0 %1232
    %1234 = vrot.lane.b32.xlu0 %v467, 94
    %v1235 = vpop.permute.xlu0 %1234
    %1236 = vrot.lane.b32.xlu0 %v469, 94
    %v1237 = vpop.permute.xlu0 %1236
    %1238 = vrot.lane.b32.xlu0 %v555, 94
    %v1239 = vpop.permute.xlu0 %1238
    %1240 = vrot.lane.b32.xlu0 %v384, 94
    %v1241 = vpop.permute.xlu0 %1240
    %1242 = vrot.lane.b32.xlu0 %v386, 94
    %v1243 = vpop.permute.xlu0 %1242
    %1244 = vrot.lane.b32.xlu0 %v473, 94
    %v1245 = vpop.permute.xlu0 %1244
    %1246 = vrot.lane.b32.xlu0 %v475, 94
    %v1247 = vpop.permute.xlu0 %1246
    %1248 = vrot.lane.b32.xlu0 %v560, 94
    %v1249 = vpop.permute.xlu0 %1248
    %1250 = vrot.lane.b32.xlu0 %v390, 94
    %v1251 = vpop.permute.xlu0 %1250
    %1252 = vrot.lane.b32.xlu0 %v392, 94
    %v1253 = vpop.permute.xlu0 %1252
    %1254 = vrot.lane.b32.xlu0 %v479, 94
    %v1255 = vpop.permute.xlu0 %1254
    %1256 = vrot.lane.b32.xlu0 %v481, 94
    %v1257 = vpop.permute.xlu0 %1256
    %1258 = vrot.lane.b32.xlu0 %v565, 94
    %v1259 = vpop.permute.xlu0 %1258
    %v1260 = vsel %vm255, %v1221, %v1223
    %v1261 = vsel %vm255, %v1223, %v1225
    %v1262 = vsel %vm255, %v1225, %v1227
    %v1263 = vsel %vm255, %v1227, %v1229
    %v1264 = vsel %vm255, %v1231, %v1233
    %v1265 = vsel %vm255, %v1233, %v1235
    %v1266 = vsel %vm255, %v1235, %v1237
    %v1267 = vsel %vm255, %v1237, %v1239
    %v1268 = vsel %vm255, %v1241, %v1243
    %v1269 = vsel %vm255, %v1243, %v1245
    %v1270 = vsel %vm255, %v1245, %v1247
    %v1271 = vsel %vm255, %v1247, %v1249
    %v1272 = vsel %vm255, %v1251, %v1253
    %v1273 = vsel %vm255, %v1253, %v1255
    %v1274 = vsel %vm255, %v1255, %v1257
    %v1275 = vsel %vm255, %v1257, %v1259
    %1292 = vst [vmem:[#allocation3 + $0x400] sm:$0xff] %v1260
    %1293 = vst [vmem:[#allocation3 + $0x408] sm:$0xff] %v1261
    %1294 = vst [vmem:[#allocation3 + $0x410] sm:$0xff] %v1262
    %1295 = vst [vmem:[#allocation3 + $0x418] sm:$0xff] %v1263
    %1296 = vst [vmem:[#allocation3 + $0x420] sm:$0xff] %v1264
    %1297 = vst [vmem:[#allocation3 + $0x428] sm:$0xff] %v1265
    %1298 = vst [vmem:[#allocation3 + $0x430] sm:$0xff] %v1266
    %1299 = vst [vmem:[#allocation3 + $0x438] sm:$0xff] %v1267
    %1300 = vst [vmem:[#allocation3 + $0x440] sm:$0xff] %v1268
    %1301 = vst [vmem:[#allocation3 + $0x448] sm:$0xff] %v1269
    %1302 = vst [vmem:[#allocation3 + $0x450] sm:$0xff] %v1270
    %1303 = vst [vmem:[#allocation3 + $0x458] sm:$0xff] %v1271
    %1304 = vst [vmem:[#allocation3 + $0x460] sm:$0xff] %v1272
    %1305 = vst [vmem:[#allocation3 + $0x468] sm:$0xff] %v1273
    %1306 = vst [vmem:[#allocation3 + $0x470] sm:$0xff] %v1274
    %1307 = vst [vmem:[#allocation3 + $0x478] sm:$0xff] %v1275
    %v1308 = vld [vmem:[#allocation4] sm:$0xff]
    %v1309 = vld [vmem:[#allocation4 + $0x8] sm:$0xff]
    %v1310 = vld [vmem:[#allocation4 + $0x10] sm:$0xff]
    %v1311 = vld [vmem:[#allocation4 + $0x18] sm:$0xff]
    %v1312 = vld [vmem:[#allocation4 + $0x20] sm:$0xff]
    %v1313 = vld [vmem:[#allocation4 + $0x28] sm:$0xff]
    %v1314 = vld [vmem:[#allocation4 + $0x30] sm:$0xff]
    %v1315 = vld [vmem:[#allocation4 + $0x38] sm:$0xff]
    %v1316 = vld [vmem:[#allocation4 + $0x40] sm:$0xff]
    %v1317 = vld [vmem:[#allocation4 + $0x48] sm:$0xff]
    %v1318 = vld [vmem:[#allocation4 + $0x50] sm:$0xff]
    %v1319 = vld [vmem:[#allocation4 + $0x58] sm:$0xff]
    %v1320 = vld [vmem:[#allocation4 + $0x60] sm:$0xff]
    %v1321 = vld [vmem:[#allocation4 + $0x68] sm:$0xff]
    %v1322 = vld [vmem:[#allocation4 + $0x70] sm:$0xff]
    %v1323 = vld [vmem:[#allocation4 + $0x78] sm:$0xff]
    %v1324 = vld [vmem:[#allocation4 + $0x80] sm:$0xff]
    %v1325 = vld [vmem:[#allocation4 + $0x88] sm:$0xff]
    %v1326 = vld [vmem:[#allocation4 + $0x90] sm:$0xff]
    %v1327 = vld [vmem:[#allocation4 + $0x98] sm:$0xff]
    %v1328 = vld [vmem:[#allocation4 + $0xa0] sm:$0xff]
    %v1329 = vld [vmem:[#allocation4 + $0xa8] sm:$0xff]
    %v1330 = vld [vmem:[#allocation4 + $0xb0] sm:$0xff]
    %v1331 = vld [vmem:[#allocation4 + $0xb8] sm:$0xff]
    %v1332 = vld [vmem:[#allocation3] sm:$0xff]
    %v1333 = vld [vmem:[#allocation3 + $0x8] sm:$0xff]
    %v1334 = vld [vmem:[#allocation3 + $0x10] sm:$0xff]
    %v1335 = vld [vmem:[#allocation3 + $0x18] sm:$0xff]
    %v1336 = vld [vmem:[#allocation3 + $0x20] sm:$0xff]
    %v1337 = vld [vmem:[#allocation3 + $0x28] sm:$0xff]
    %v1338 = vld [vmem:[#allocation3 + $0x30] sm:$0xff]
    %v1339 = vld [vmem:[#allocation3 + $0x38] sm:$0xff]
    %v1340 = vld [vmem:[#allocation3 + $0x40] sm:$0xff]
    %v1341 = vld [vmem:[#allocation3 + $0x48] sm:$0xff]
    %v1342 = vld [vmem:[#allocation3 + $0x50] sm:$0xff]
    %v1343 = vld [vmem:[#allocation3 + $0x58] sm:$0xff]
    %v1344 = vld [vmem:[#allocation3 + $0x60] sm:$0xff]
    %v1345 = vld [vmem:[#allocation3 + $0x68] sm:$0xff]
    %v1346 = vld [vmem:[#allocation3 + $0x70] sm:$0xff]
    %v1347 = vld [vmem:[#allocation3 + $0x78] sm:$0xff]
    %v1348 = vld [vmem:[#allocation3 + $0x80] sm:$0xff]
    %v1349 = vld [vmem:[#allocation3 + $0x88] sm:$0xff]
    %v1350 = vld [vmem:[#allocation3 + $0x90] sm:$0xff]
    %v1351 = vld [vmem:[#allocation3 + $0x98] sm:$0xff]
    %v1352 = vld [vmem:[#allocation3 + $0xa0] sm:$0xff]
    %v1353 = vld [vmem:[#allocation3 + $0xa8] sm:$0xff]
    %v1354 = vld [vmem:[#allocation3 + $0xb0] sm:$0xff]
    %v1355 = vld [vmem:[#allocation3 + $0xb8] sm:$0xff]
    %v1356 = vld [vmem:[#allocation3 + $0xc0] sm:$0xff]
    %v1357 = vld [vmem:[#allocation3 + $0xc8] sm:$0xff]
    %v1358 = vld [vmem:[#allocation3 + $0xd0] sm:$0xff]
    %v1359 = vld [vmem:[#allocation3 + $0xd8] sm:$0xff]
    %v1360 = vld [vmem:[#allocation3 + $0xe0] sm:$0xff]
    %v1361 = vld [vmem:[#allocation3 + $0xe8] sm:$0xff]
    %v1362 = vld [vmem:[#allocation3 + $0xf0] sm:$0xff]
    %v1363 = vld [vmem:[#allocation3 + $0xf8] sm:$0xff]
    %v1364 = vld [vmem:[#allocation3 + $0x100] sm:$0xff]
    %v1365 = vld [vmem:[#allocation3 + $0x108] sm:$0xff]
    %v1366 = vld [vmem:[#allocation3 + $0x110] sm:$0xff]
    %v1367 = vld [vmem:[#allocation3 + $0x118] sm:$0xff]
    %v1368 = vld [vmem:[#allocation3 + $0x120] sm:$0xff]
    %v1369 = vld [vmem:[#allocation3 + $0x128] sm:$0xff]
    %v1370 = vld [vmem:[#allocation3 + $0x130] sm:$0xff]
    %v1371 = vld [vmem:[#allocation3 + $0x138] sm:$0xff]
    %v1372 = vld [vmem:[#allocation3 + $0x140] sm:$0xff]
    %v1373 = vld [vmem:[#allocation3 + $0x148] sm:$0xff]
    %v1374 = vld [vmem:[#allocation3 + $0x150] sm:$0xff]
    %v1375 = vld [vmem:[#allocation3 + $0x158] sm:$0xff]
    %v1376 = vld [vmem:[#allocation3 + $0x160] sm:$0xff]
    %v1377 = vld [vmem:[#allocation3 + $0x168] sm:$0xff]
    %v1378 = vld [vmem:[#allocation3 + $0x170] sm:$0xff]
    %v1379 = vld [vmem:[#allocation3 + $0x178] sm:$0xff]
    %v1380 = vld [vmem:[#allocation3 + $0x180] sm:$0xff]
    %v1381 = vld [vmem:[#allocation3 + $0x188] sm:$0xff]
    %v1382 = vld [vmem:[#allocation3 + $0x190] sm:$0xff]
    %v1383 = vld [vmem:[#allocation3 + $0x198] sm:$0xff]
    %v1384 = vld [vmem:[#allocation3 + $0x1a0] sm:$0xff]
    %v1385 = vld [vmem:[#allocation3 + $0x1a8] sm:$0xff]
    %v1386 = vld [vmem:[#allocation3 + $0x1b0] sm:$0xff]
    %v1387 = vld [vmem:[#allocation3 + $0x1b8] sm:$0xff]
    %v1388 = vld [vmem:[#allocation3 + $0x1c0] sm:$0xff]
    %v1389 = vld [vmem:[#allocation3 + $0x1c8] sm:$0xff]
    %v1390 = vld [vmem:[#allocation3 + $0x1d0] sm:$0xff]
    %v1391 = vld [vmem:[#allocation3 + $0x1d8] sm:$0xff]
    %v1392 = vld [vmem:[#allocation3 + $0x1e0] sm:$0xff]
    %v1393 = vld [vmem:[#allocation3 + $0x1e8] sm:$0xff]
    %v1394 = vld [vmem:[#allocation3 + $0x1f0] sm:$0xff]
    %v1395 = vld [vmem:[#allocation3 + $0x1f8] sm:$0xff]
    %v1396 = vld [vmem:[#allocation3 + $0x200] sm:$0xff]
    %v1397 = vld [vmem:[#allocation3 + $0x208] sm:$0xff]
    %v1398 = vld [vmem:[#allocation3 + $0x210] sm:$0xff]
    %v1399 = vld [vmem:[#allocation3 + $0x218] sm:$0xff]
    %v1400 = vld [vmem:[#allocation3 + $0x220] sm:$0xff]
    %v1401 = vld [vmem:[#allocation3 + $0x228] sm:$0xff]
    %v1402 = vld [vmem:[#allocation3 + $0x230] sm:$0xff]
    %v1403 = vld [vmem:[#allocation3 + $0x238] sm:$0xff]
    %v1404 = vld [vmem:[#allocation3 + $0x240] sm:$0xff]
    %v1405 = vld [vmem:[#allocation3 + $0x248] sm:$0xff]
    %v1406 = vld [vmem:[#allocation3 + $0x250] sm:$0xff]
    %v1407 = vld [vmem:[#allocation3 + $0x258] sm:$0xff]
    %v1408 = vld [vmem:[#allocation3 + $0x260] sm:$0xff]
    %v1409 = vld [vmem:[#allocation3 + $0x268] sm:$0xff]
    %v1410 = vld [vmem:[#allocation3 + $0x270] sm:$0xff]
    %v1411 = vld [vmem:[#allocation3 + $0x278] sm:$0xff]
    %v1412 = vld [vmem:[#allocation3 + $0x280] sm:$0xff]
    %v1413 = vld [vmem:[#allocation3 + $0x288] sm:$0xff]
    %v1414 = vld [vmem:[#allocation3 + $0x290] sm:$0xff]
    %v1415 = vld [vmem:[#allocation3 + $0x298] sm:$0xff]
    %v1416 = vld [vmem:[#allocation3 + $0x2a0] sm:$0xff]
    %v1417 = vld [vmem:[#allocation3 + $0x2a8] sm:$0xff]
    %v1418 = vld [vmem:[#allocation3 + $0x2b0] sm:$0xff]
    %v1419 = vld [vmem:[#allocation3 + $0x2b8] sm:$0xff]
    %v1420 = vld [vmem:[#allocation3 + $0x2c0] sm:$0xff]
    %v1421 = vld [vmem:[#allocation3 + $0x2c8] sm:$0xff]
    %v1422 = vld [vmem:[#allocation3 + $0x2d0] sm:$0xff]
    %v1423 = vld [vmem:[#allocation3 + $0x2d8] sm:$0xff]
    %v1424 = vld [vmem:[#allocation3 + $0x2e0] sm:$0xff]
    %v1425 = vld [vmem:[#allocation3 + $0x2e8] sm:$0xff]
    %v1426 = vld [vmem:[#allocation3 + $0x2f0] sm:$0xff]
    %v1427 = vld [vmem:[#allocation3 + $0x2f8] sm:$0xff]
    %v1428 = vld [vmem:[#allocation3 + $0x300] sm:$0xff]
    %v1429 = vld [vmem:[#allocation3 + $0x308] sm:$0xff]
    %v1430 = vld [vmem:[#allocation3 + $0x310] sm:$0xff]
    %v1431 = vld [vmem:[#allocation3 + $0x318] sm:$0xff]
    %v1432 = vld [vmem:[#allocation3 + $0x320] sm:$0xff]
    %v1433 = vld [vmem:[#allocation3 + $0x328] sm:$0xff]
    %v1434 = vld [vmem:[#allocation3 + $0x330] sm:$0xff]
    %v1435 = vld [vmem:[#allocation3 + $0x338] sm:$0xff]
    %v1436 = vld [vmem:[#allocation3 + $0x340] sm:$0xff]
    %v1437 = vld [vmem:[#allocation3 + $0x348] sm:$0xff]
    %v1438 = vld [vmem:[#allocation3 + $0x350] sm:$0xff]
    %v1439 = vld [vmem:[#allocation3 + $0x358] sm:$0xff]
    %v1440 = vld [vmem:[#allocation3 + $0x360] sm:$0xff]
    %v1441 = vld [vmem:[#allocation3 + $0x368] sm:$0xff]
    %v1442 = vld [vmem:[#allocation3 + $0x370] sm:$0xff]
    %v1443 = vld [vmem:[#allocation3 + $0x378] sm:$0xff]
    %v1444 = vld [vmem:[#allocation3 + $0x380] sm:$0xff]
    %v1445 = vld [vmem:[#allocation3 + $0x388] sm:$0xff]
    %v1446 = vld [vmem:[#allocation3 + $0x390] sm:$0xff]
    %v1447 = vld [vmem:[#allocation3 + $0x398] sm:$0xff]
    %v1448 = vld [vmem:[#allocation3 + $0x3a0] sm:$0xff]
    %v1449 = vld [vmem:[#allocation3 + $0x3a8] sm:$0xff]
    %v1450 = vld [vmem:[#allocation3 + $0x3b0] sm:$0xff]
    %v1451 = vld [vmem:[#allocation3 + $0x3b8] sm:$0xff]
    %v1452 = vld [vmem:[#allocation3 + $0x3c0] sm:$0xff]
    %v1453 = vld [vmem:[#allocation3 + $0x3c8] sm:$0xff]
    %v1454 = vld [vmem:[#allocation3 + $0x3d0] sm:$0xff]
    %v1455 = vld [vmem:[#allocation3 + $0x3d8] sm:$0xff]
    %v1456 = vld [vmem:[#allocation3 + $0x3e0] sm:$0xff]
    %v1457 = vld [vmem:[#allocation3 + $0x3e8] sm:$0xff]
    %v1458 = vld [vmem:[#allocation3 + $0x3f0] sm:$0xff]
    %v1459 = vld [vmem:[#allocation3 + $0x3f8] sm:$0xff]
    %v1460 = vld [vmem:[#allocation3 + $0x400] sm:$0xff]
    %v1461 = vld [vmem:[#allocation3 + $0x408] sm:$0xff]
    %v1462 = vld [vmem:[#allocation3 + $0x410] sm:$0xff]
    %v1463 = vld [vmem:[#allocation3 + $0x418] sm:$0xff]
    %v1464 = vld [vmem:[#allocation3 + $0x420] sm:$0xff]
    %v1465 = vld [vmem:[#allocation3 + $0x428] sm:$0xff]
    %v1466 = vld [vmem:[#allocation3 + $0x430] sm:$0xff]
    %v1467 = vld [vmem:[#allocation3 + $0x438] sm:$0xff]
    %v1468 = vld [vmem:[#allocation3 + $0x440] sm:$0xff]
    %v1469 = vld [vmem:[#allocation3 + $0x448] sm:$0xff]
    %v1470 = vld [vmem:[#allocation3 + $0x450] sm:$0xff]
    %v1471 = vld [vmem:[#allocation3 + $0x458] sm:$0xff]
    %v1472 = vld [vmem:[#allocation3 + $0x460] sm:$0xff]
    %v1473 = vld [vmem:[#allocation3 + $0x468] sm:$0xff]
    %v1474 = vld [vmem:[#allocation3 + $0x470] sm:$0xff]
    %v1475 = vld [vmem:[#allocation3 + $0x478] sm:$0xff]
    %vm1476 = vcmask 261120
    %v1478 = vsel %vm1476, %v1310, 0
    %v1481 = vsel %vm1476, %v1313, 0
    %v1484 = vsel %vm1476, %v1316, 0
    %v1487 = vsel %vm1476, %v1319, 0
    %v1490 = vsel %vm1476, %v1322, 0
    %v1493 = vsel %vm1476, %v1325, 0
    %v1496 = vsel %vm1476, %v1328, 0
    %v1499 = vsel %vm1476, %v1331, 0
    %1501 = vmatprep.subr.mxu0 %v1393
    %1502 = vmatpush1.msra.mxu0 %v1392
    %1503 = vmatprep.subr.mxu0 %v1389
    %1504 = vmatpush1.msra.mxu0 %v1388
    %1505 = vmatprep.subr.mxu0 %v1385
    %1506 = vmatpush1.msra.mxu0 %v1384
    %1507 = vmatprep.subr.mxu0 %v1381
    %1508 = vmatpush1.msra.mxu0 %v1380
    %1509 = vmatprep.subr.mxu0 %v1377
    %1510 = vmatpush1.msra.mxu0 %v1376
    %1511 = vmatprep.subr.mxu0 %v1373
    %1512 = vmatpush1.msra.mxu0 %v1372
    %1513 = vmatprep.subr.mxu0 %v1369
    %1514 = vmatpush1.msra.mxu0 %v1368
    %1515 = vmatprep.subr.mxu0 %v1365
    %1516 = vmatpush1.msra.mxu0 %v1364
    %1517 = vmatprep.subr.mxu0 %v1361
    %1518 = vmatpush1.msra.mxu0 %v1360
    %1519 = vmatprep.subr.mxu0 %v1357
    %1520 = vmatpush1.msra.mxu0 %v1356
    %1521 = vmatprep.subr.mxu0 %v1353
    %1522 = vmatpush1.msra.mxu0 %v1352
    %1523 = vmatprep.subr.mxu0 %v1349
    %1524 = vmatpush1.msra.mxu0 %v1348
    %1525 = vmatprep.subr.mxu0 %v1345
    %1526 = vmatpush1.msra.mxu0 %v1344
    %1527 = vmatprep.subr.mxu0 %v1341
    %1528 = vmatpush1.msra.mxu0 %v1340
    %1529 = vmatprep.subr.mxu0 %v1337
    %1530 = vmatpush1.msra.mxu0 %v1336
    %1531 = vmatprep.subr.mxu0 %v1333
    %1532 = vmatpush1.msra.mxu0 %v1332
    %1533 = vmatprep.subr.mxu0 %v1457
    %1534 = vmatpush2.msra.mxu0 %v1456
    %1535 = vmatprep.subr.mxu0 %v1453
    %1536 = vmatpush2.msra.mxu0 %v1452
    %1537 = vmatprep.subr.mxu0 %v1449
    %1538 = vmatpush2.msra.mxu0 %v1448
    %1539 = vmatprep.subr.mxu0 %v1445
    %1540 = vmatpush2.msra.mxu0 %v1444
    %1541 = vmatprep.subr.mxu0 %v1441
    %1542 = vmatpush2.msra.mxu0 %v1440
    %1543 = vmatprep.subr.mxu0 %v1437
    %1544 = vmatpush2.msra.mxu0 %v1436
    %1545 = vmatprep.subr.mxu0 %v1433
    %1546 = vmatpush2.msra.mxu0 %v1432
    %1547 = vmatprep.subr.mxu0 %v1429
    %1548 = vmatpush2.msra.mxu0 %v1428
    %1549 = vmatprep.subr.mxu0 %v1425
    %1550 = vmatpush2.msra.mxu0 %v1424
    %1551 = vmatprep.subr.mxu0 %v1421
    %1552 = vmatpush2.msra.mxu0 %v1420
    %1553 = vmatprep.subr.mxu0 %v1417
    %1554 = vmatpush2.msra.mxu0 %v1416
    %1555 = vmatprep.subr.mxu0 %v1413
    %1556 = vmatpush2.msra.mxu0 %v1412
    %1557 = vmatprep.subr.mxu0 %v1409
    %1558 = vmatpush2.msra.mxu0 %v1408
    %1559 = vmatprep.subr.mxu0 %v1405
    %1560 = vmatpush2.msra.mxu0 %v1404
    %1561 = vmatprep.subr.mxu0 %v1401
    %1562 = vmatpush2.msra.mxu0 %v1400
    %1563 = vmatprep.subr.mxu0 %v1397
    %1564 = vmatpush2.msra.mxu0 %v1396
    %1565 = vmatprep.mubr.f32.mxu0 %v1309
    %1566 = vmatmul.mubr.f32.gmra.mxu0 %v1308
    %v1567 = vpop.f32.mrf.mxu0
    %v1568 = vadd.f32 0.0, %v1567
    %v1569 = vpop.f32.mrf.mxu0
    %v1570 = vadd.f32 0.0, %v1569
    %1571 = vmatprep.mubr.f32.mxu0 %v1312
    %1572 = vmatmul.mubr.f32.gmra.mxu0 %v1311
    %v1573 = vpop.f32.mrf.mxu0
    %v1574 = vadd.f32 0.0, %v1573
    %v1575 = vpop.f32.mrf.mxu0
    %v1576 = vadd.f32 0.0, %v1575
    %1577 = vmatprep.mubr.f32.mxu0 %v1315
    %1578 = vmatmul.mubr.f32.gmra.mxu0 %v1314
    %v1579 = vpop.f32.mrf.mxu0
    %v1580 = vadd.f32 0.0, %v1579
    %v1581 = vpop.f32.mrf.mxu0
    %v1582 = vadd.f32 0.0, %v1581
    %1583 = vmatprep.mubr.f32.mxu0 %v1318
    %1584 = vmatmul.mubr.f32.gmra.mxu0 %v1317
    %v1585 = vpop.f32.mrf.mxu0
    %v1586 = vadd.f32 0.0, %v1585
    %v1587 = vpop.f32.mrf.mxu0
    %v1588 = vadd.f32 0.0, %v1587
    %1589 = vmatprep.mubr.f32.mxu0 %v1321
    %1590 = vmatmul.mubr.f32.gmra.mxu0 %v1320
    %v1591 = vpop.f32.mrf.mxu0
    %v1592 = vadd.f32 0.0, %v1591
    %v1593 = vpop.f32.mrf.mxu0
    %v1594 = vadd.f32 0.0, %v1593
    %1595 = vmatprep.mubr.f32.mxu0 %v1324
    %1596 = vmatmul.mubr.f32.gmra.mxu0 %v1323
    %v1597 = vpop.f32.mrf.mxu0
    %v1598 = vadd.f32 0.0, %v1597
    %v1599 = vpop.f32.mrf.mxu0
    %v1600 = vadd.f32 0.0, %v1599
    %1601 = vmatprep.mubr.f32.mxu0 %v1327
    %1602 = vmatmul.mubr.f32.gmra.mxu0 %v1326
    %v1603 = vpop.f32.mrf.mxu0
    %v1604 = vadd.f32 0.0, %v1603
    %v1605 = vpop.f32.mrf.mxu0
    %v1606 = vadd.f32 0.0, %v1605
    %1607 = vmatprep.mubr.f32.mxu0 %v1330
    %1608 = vmatmul.mubr.f32.gmra.mxu0 %v1329
    %v1609 = vpop.f32.mrf.mxu0
    %v1610 = vadd.f32 0.0, %v1609
    %v1611 = vpop.f32.mrf.mxu0
    %v1612 = vadd.f32 0.0, %v1611
    %1613 = vdwg.mxu0
    %1614 = vmatprep.subr.mxu0 0.0
    %1615 = vmatpush1.msra.mxu0 0.0
    %1616 = vmatprep.subr.mxu0 0.0
    %1617 = vmatpush1.msra.mxu0 0.0
    %1618 = vmatprep.subr.mxu0 0.0
    %1619 = vmatpush1.msra.mxu0 0.0
    %1620 = vmatprep.subr.mxu0 0.0
    %1621 = vmatpush1.msra.mxu0 0.0
    %1622 = vmatprep.subr.mxu0 0.0
    %1623 = vmatpush1.msra.mxu0 0.0
    %1624 = vmatprep.subr.mxu0 0.0
    %1625 = vmatpush1.msra.mxu0 0.0
    %1626 = vmatprep.subr.mxu0 0.0
    %1627 = vmatpush1.msra.mxu0 0.0
    %1628 = vmatprep.subr.mxu0 0.0
    %1629 = vmatpush1.msra.mxu0 0.0
    %1630 = vmatprep.subr.mxu0 0.0
    %1631 = vmatpush1.msra.mxu0 0.0
    %1632 = vmatprep.subr.mxu0 0.0
    %1633 = vmatpush1.msra.mxu0 0.0
    %1634 = vmatprep.subr.mxu0 0.0
    %1635 = vmatpush1.msra.mxu0 0.0
    %1636 = vmatprep.subr.mxu0 0.0
    %1637 = vmatpush1.msra.mxu0 0.0
    %1638 = vmatprep.subr.mxu0 %v1473
    %1639 = vmatpush1.msra.mxu0 %v1472
    %1640 = vmatprep.subr.mxu0 %v1469
    %1641 = vmatpush1.msra.mxu0 %v1468
    %1642 = vmatprep.subr.mxu0 %v1465
    %1643 = vmatpush1.msra.mxu0 %v1464
    %1644 = vmatprep.subr.mxu0 %v1461
    %1645 = vmatpush1.msra.mxu0 %v1460
    %1646 = vmatprep.subr.mxu0 0.0
    %1647 = vmatpush2.msra.mxu0 0.0
    %1648 = vmatprep.subr.mxu0 0.0
    %1649 = vmatpush2.msra.mxu0 0.0
    %1650 = vmatprep.subr.mxu0 0.0
    %1651 = vmatpush2.msra.mxu0 0.0
    %1652 = vmatprep.subr.mxu0 0.0
    %1653 = vmatpush2.msra.mxu0 0.0
    %1654 = vmatprep.subr.mxu0 0.0
    %1655 = vmatpush2.msra.mxu0 0.0
    %1656 = vmatprep.subr.mxu0 0.0
    %1657 = vmatpush2.msra.mxu0 0.0
    %1658 = vmatprep.subr.mxu0 0.0
    %1659 = vmatpush2.msra.mxu0 0.0
    %1660 = vmatprep.subr.mxu0 0.0
    %1661 = vmatpush2.msra.mxu0 0.0
    %1662 = vmatprep.subr.mxu0 0.0
    %1663 = vmatpush2.msra.mxu0 0.0
    %1664 = vmatprep.subr.mxu0 0.0
    %1665 = vmatpush2.msra.mxu0 0.0
    %1666 = vmatprep.subr.mxu0 0.0
    %1667 = vmatpush2.msra.mxu0 0.0
    %1668 = vmatprep.subr.mxu0 0.0
    %1669 = vmatpush2.msra.mxu0 0.0
    %1670 = vmatprep.subr.mxu0 0.0
    %1671 = vmatpush2.msra.mxu0 0.0
    %1672 = vmatprep.subr.mxu0 0.0
    %1673 = vmatpush2.msra.mxu0 0.0
    %1674 = vmatprep.subr.mxu0 0.0
    %1675 = vmatpush2.msra.mxu0 0.0
    %1676 = vmatprep.subr.mxu0 0.0
    %1677 = vmatpush2.msra.mxu0 0.0
    %1678 = vmatprep.mubr.f32.mxu0 0.0
    %1679 = vmatmul.mubr.f32.gmra.mxu0 %v1478
    %v1680 = vpop.f32.mrf.mxu0
    %v1681 = vadd.f32 %v1568, %v1680
    %v1682 = vpop.f32.mrf.mxu0
    %v1683 = vadd.f32 %v1570, %v1682
    %1684 = vmatprep.mubr.f32.mxu0 0.0
    %1685 = vmatmul.mubr.f32.gmra.mxu0 %v1481
    %v1686 = vpop.f32.mrf.mxu0
    %v1687 = vadd.f32 %v1574, %v1686
    %v1688 = vpop.f32.mrf.mxu0
    %v1689 = vadd.f32 %v1576, %v1688
    %1690 = vmatprep.mubr.f32.mxu0 0.0
    %1691 = vmatmul.mubr.f32.gmra.mxu0 %v1484
    %v1692 = vpop.f32.mrf.mxu0
    %v1693 = vadd.f32 %v1580, %v1692
    %v1694 = vpop.f32.mrf.mxu0
    %v1695 = vadd.f32 %v1582, %v1694
    %1696 = vmatprep.mubr.f32.mxu0 0.0
    %1697 = vmatmul.mubr.f32.gmra.mxu0 %v1487
    %v1698 = vpop.f32.mrf.mxu0
    %v1699 = vadd.f32 %v1586, %v1698
    %v1700 = vpop.f32.mrf.mxu0
    %v1701 = vadd.f32 %v1588, %v1700
    %1702 = vmatprep.mubr.f32.mxu0 0.0
    %1703 = vmatmul.mubr.f32.gmra.mxu0 %v1490
    %v1704 = vpop.f32.mrf.mxu0
    %v1705 = vadd.f32 %v1592, %v1704
    %v1706 = vpop.f32.mrf.mxu0
    %v1707 = vadd.f32 %v1594, %v1706
    %1708 = vmatprep.mubr.f32.mxu0 0.0
    %1709 = vmatmul.mubr.f32.gmra.mxu0 %v1493
    %v1710 = vpop.f32.mrf.mxu0
    %v1711 = vadd.f32 %v1598, %v1710
    %v1712 = vpop.f32.mrf.mxu0
    %v1713 = vadd.f32 %v1600, %v1712
    %1714 = vmatprep.mubr.f32.mxu0 0.0
    %1715 = vmatmul.mubr.f32.gmra.mxu0 %v1496
    %v1716 = vpop.f32.mrf.mxu0
    %v1717 = vadd.f32 %v1604, %v1716
    %v1718 = vpop.f32.mrf.mxu0
    %v1719 = vadd.f32 %v1606, %v1718
    %1720 = vmatprep.mubr.f32.mxu0 0.0
    %1721 = vmatmul.mubr.f32.gmra.mxu0 %v1499
    %v1722 = vpop.f32.mrf.mxu0
    %v1723 = vadd.f32 %v1610, %v1722
    %v1724 = vpop.f32.mrf.mxu0
    %v1725 = vadd.f32 %v1612, %v1724
    %1726 = vdwg.mxu0
    %1727 = vmatprep.subr.mxu0 %v1395
    %1728 = vmatpush1.msra.mxu0 %v1394
    %1729 = vmatprep.subr.mxu0 %v1391
    %1730 = vmatpush1.msra.mxu0 %v1390
    %1731 = vmatprep.subr.mxu0 %v1387
    %1732 = vmatpush1.msra.mxu0 %v1386
    %1733 = vmatprep.subr.mxu0 %v1383
    %1734 = vmatpush1.msra.mxu0 %v1382
    %1735 = vmatprep.subr.mxu0 %v1379
    %1736 = vmatpush1.msra.mxu0 %v1378
    %1737 = vmatprep.subr.mxu0 %v1375
    %1738 = vmatpush1.msra.mxu0 %v1374
    %1739 = vmatprep.subr.mxu0 %v1371
    %1740 = vmatpush1.msra.mxu0 %v1370
    %1741 = vmatprep.subr.mxu0 %v1367
    %1742 = vmatpush1.msra.mxu0 %v1366
    %1743 = vmatprep.subr.mxu0 %v1363
    %1744 = vmatpush1.msra.mxu0 %v1362
    %1745 = vmatprep.subr.mxu0 %v1359
    %1746 = vmatpush1.msra.mxu0 %v1358
    %1747 = vmatprep.subr.mxu0 %v1355
    %1748 = vmatpush1.msra.mxu0 %v1354
    %1749 = vmatprep.subr.mxu0 %v1351
    %1750 = vmatpush1.msra.mxu0 %v1350
    %1751 = vmatprep.subr.mxu0 %v1347
    %1752 = vmatpush1.msra.mxu0 %v1346
    %1753 = vmatprep.subr.mxu0 %v1343
    %1754 = vmatpush1.msra.mxu0 %v1342
    %1755 = vmatprep.subr.mxu0 %v1339
    %1756 = vmatpush1.msra.mxu0 %v1338
    %1757 = vmatprep.subr.mxu0 %v1335
    %1758 = vmatpush1.msra.mxu0 %v1334
    %1759 = vmatprep.subr.mxu0 %v1459
    %1760 = vmatpush2.msra.mxu0 %v1458
    %1761 = vmatprep.subr.mxu0 %v1455
    %1762 = vmatpush2.msra.mxu0 %v1454
    %1763 = vmatprep.subr.mxu0 %v1451
    %1764 = vmatpush2.msra.mxu0 %v1450
    %1765 = vmatprep.subr.mxu0 %v1447
    %1766 = vmatpush2.msra.mxu0 %v1446
    %1767 = vmatprep.subr.mxu0 %v1443
    %1768 = vmatpush2.msra.mxu0 %v1442
    %1769 = vmatprep.subr.mxu0 %v1439
    %1770 = vmatpush2.msra.mxu0 %v1438
    %1771 = vmatprep.subr.mxu0 %v1435
    %1772 = vmatpush2.msra.mxu0 %v1434
    %1773 = vmatprep.subr.mxu0 %v1431
    %1774 = vmatpush2.msra.mxu0 %v1430
    %1775 = vmatprep.subr.mxu0 %v1427
    %1776 = vmatpush2.msra.mxu0 %v1426
    %1777 = vmatprep.subr.mxu0 %v1423
    %1778 = vmatpush2.msra.mxu0 %v1422
    %1779 = vmatprep.subr.mxu0 %v1419
    %1780 = vmatpush2.msra.mxu0 %v1418
    %1781 = vmatprep.subr.mxu0 %v1415
    %1782 = vmatpush2.msra.mxu0 %v1414
    %1783 = vmatprep.subr.mxu0 %v1411
    %1784 = vmatpush2.msra.mxu0 %v1410
    %1785 = vmatprep.subr.mxu0 %v1407
    %1786 = vmatpush2.msra.mxu0 %v1406
    %1787 = vmatprep.subr.mxu0 %v1403
    %1788 = vmatpush2.msra.mxu0 %v1402
    %1789 = vmatprep.subr.mxu0 %v1399
    %1790 = vmatpush2.msra.mxu0 %v1398
    %1791 = vmatprep.mubr.f32.mxu0 %v1309
    %1792 = vmatmul.mubr.f32.gmra.mxu0 %v1308
    %v1793 = vpop.f32.mrf.mxu0
    %v1794 = vadd.f32 0.0, %v1793
    %v1795 = vpop.f32.mrf.mxu0
    %v1796 = vadd.f32 0.0, %v1795
    %1797 = vmatprep.mubr.f32.mxu0 %v1312
    %1798 = vmatmul.mubr.f32.gmra.mxu0 %v1311
    %v1799 = vpop.f32.mrf.mxu0
    %v1800 = vadd.f32 0.0, %v1799
    %v1801 = vpop.f32.mrf.mxu0
    %v1802 = vadd.f32 0.0, %v1801
    %1803 = vmatprep.mubr.f32.mxu0 %v1315
    %1804 = vmatmul.mubr.f32.gmra.mxu0 %v1314
    %v1805 = vpop.f32.mrf.mxu0
    %v1806 = vadd.f32 0.0, %v1805
    %v1807 = vpop.f32.mrf.mxu0
    %v1808 = vadd.f32 0.0, %v1807
    %1809 = vmatprep.mubr.f32.mxu0 %v1318
    %1810 = vmatmul.mubr.f32.gmra.mxu0 %v1317
    %v1811 = vpop.f32.mrf.mxu0
    %v1812 = vadd.f32 0.0, %v1811
    %v1813 = vpop.f32.mrf.mxu0
    %v1814 = vadd.f32 0.0, %v1813
    %1815 = vmatprep.mubr.f32.mxu0 %v1321
    %1816 = vmatmul.mubr.f32.gmra.mxu0 %v1320
    %v1817 = vpop.f32.mrf.mxu0
    %v1818 = vadd.f32 0.0, %v1817
    %v1819 = vpop.f32.mrf.mxu0
    %v1820 = vadd.f32 0.0, %v1819
    %1821 = vmatprep.mubr.f32.mxu0 %v1324
    %1822 = vmatmul.mubr.f32.gmra.mxu0 %v1323
    %v1823 = vpop.f32.mrf.mxu0
    %v1824 = vadd.f32 0.0, %v1823
    %v1825 = vpop.f32.mrf.mxu0
    %v1826 = vadd.f32 0.0, %v1825
    %1827 = vmatprep.mubr.f32.mxu0 %v1327
    %1828 = vmatmul.mubr.f32.gmra.mxu0 %v1326
    %v1829 = vpop.f32.mrf.mxu0
    %v1830 = vadd.f32 0.0, %v1829
    %v1831 = vpop.f32.mrf.mxu0
    %v1832 = vadd.f32 0.0, %v1831
    %1833 = vmatprep.mubr.f32.mxu0 %v1330
    %1834 = vmatmul.mubr.f32.gmra.mxu0 %v1329
    %v1835 = vpop.f32.mrf.mxu0
    %v1836 = vadd.f32 0.0, %v1835
    %v1837 = vpop.f32.mrf.mxu0
    %v1838 = vadd.f32 0.0, %v1837
    %1839 = vdwg.mxu0
    %1840 = vmatprep.subr.mxu0 0.0
    %1841 = vmatpush1.msra.mxu0 0.0
    %1842 = vmatprep.subr.mxu0 0.0
    %1843 = vmatpush1.msra.mxu0 0.0
    %1844 = vmatprep.subr.mxu0 0.0
    %1845 = vmatpush1.msra.mxu0 0.0
    %1846 = vmatprep.subr.mxu0 0.0
    %1847 = vmatpush1.msra.mxu0 0.0
    %1848 = vmatprep.subr.mxu0 0.0
    %1849 = vmatpush1.msra.mxu0 0.0
    %1850 = vmatprep.subr.mxu0 0.0
    %1851 = vmatpush1.msra.mxu0 0.0
    %1852 = vmatprep.subr.mxu0 0.0
    %1853 = vmatpush1.msra.mxu0 0.0
    %1854 = vmatprep.subr.mxu0 0.0
    %1855 = vmatpush1.msra.mxu0 0.0
    %1856 = vmatprep.subr.mxu0 0.0
    %1857 = vmatpush1.msra.mxu0 0.0
    %1858 = vmatprep.subr.mxu0 0.0
    %1859 = vmatpush1.msra.mxu0 0.0
    %1860 = vmatprep.subr.mxu0 0.0
    %1861 = vmatpush1.msra.mxu0 0.0
    %1862 = vmatprep.subr.mxu0 0.0
    %1863 = vmatpush1.msra.mxu0 0.0
    %1864 = vmatprep.subr.mxu0 %v1475
    %1865 = vmatpush1.msra.mxu0 %v1474
    %1866 = vmatprep.subr.mxu0 %v1471
    %1867 = vmatpush1.msra.mxu0 %v1470
    %1868 = vmatprep.subr.mxu0 %v1467
    %1869 = vmatpush1.msra.mxu0 %v1466
    %1870 = vmatprep.subr.mxu0 %v1463
    %1871 = vmatpush1.msra.mxu0 %v1462
    %1872 = vmatprep.subr.mxu0 0.0
    %1873 = vmatpush2.msra.mxu0 0.0
    %1874 = vmatprep.subr.mxu0 0.0
    %1875 = vmatpush2.msra.mxu0 0.0
    %1876 = vmatprep.subr.mxu0 0.0
    %1877 = vmatpush2.msra.mxu0 0.0
    %1878 = vmatprep.subr.mxu0 0.0
    %1879 = vmatpush2.msra.mxu0 0.0
    %1880 = vmatprep.subr.mxu0 0.0
    %1881 = vmatpush2.msra.mxu0 0.0
    %1882 = vmatprep.subr.mxu0 0.0
    %1883 = vmatpush2.msra.mxu0 0.0
    %1884 = vmatprep.subr.mxu0 0.0
    %1885 = vmatpush2.msra.mxu0 0.0
    %1886 = vmatprep.subr.mxu0 0.0
    %1887 = vmatpush2.msra.mxu0 0.0
    %1888 = vmatprep.subr.mxu0 0.0
    %1889 = vmatpush2.msra.mxu0 0.0
    %1890 = vmatprep.subr.mxu0 0.0
    %1891 = vmatpush2.msra.mxu0 0.0
    %1892 = vmatprep.subr.mxu0 0.0
    %1893 = vmatpush2.msra.mxu0 0.0
    %1894 = vmatprep.subr.mxu0 0.0
    %1895 = vmatpush2.msra.mxu0 0.0
    %1896 = vmatprep.subr.mxu0 0.0
    %1897 = vmatpush2.msra.mxu0 0.0
    %1898 = vmatprep.subr.mxu0 0.0
    %1899 = vmatpush2.msra.mxu0 0.0
    %1900 = vmatprep.subr.mxu0 0.0
    %1901 = vmatpush2.msra.mxu0 0.0
    %1902 = vmatprep.subr.mxu0 0.0
    %1903 = vmatpush2.msra.mxu0 0.0
    %1904 = vmatprep.mubr.f32.mxu0 0.0
    %1905 = vmatmul.mubr.f32.gmra.mxu0 %v1478
    %v1906 = vpop.f32.mrf.mxu0
    %v1907 = vadd.f32 %v1794, %v1906
    %v1908 = vpop.f32.mrf.mxu0
    %v1909 = vadd.f32 %v1796, %v1908
    %1910 = vmatprep.mubr.f32.mxu0 0.0
    %1911 = vmatmul.mubr.f32.gmra.mxu0 %v1481
    %v1912 = vpop.f32.mrf.mxu0
    %v1913 = vadd.f32 %v1800, %v1912
    %v1914 = vpop.f32.mrf.mxu0
    %v1915 = vadd.f32 %v1802, %v1914
    %1916 = vmatprep.mubr.f32.mxu0 0.0
    %1917 = vmatmul.mubr.f32.gmra.mxu0 %v1484
    %v1918 = vpop.f32.mrf.mxu0
    %v1919 = vadd.f32 %v1806, %v1918
    %v1920 = vpop.f32.mrf.mxu0
    %v1921 = vadd.f32 %v1808, %v1920
    %1922 = vmatprep.mubr.f32.mxu0 0.0
    %1923 = vmatmul.mubr.f32.gmra.mxu0 %v1487
    %v1924 = vpop.f32.mrf.mxu0
    %v1925 = vadd.f32 %v1812, %v1924
    %v1926 = vpop.f32.mrf.mxu0
    %v1927 = vadd.f32 %v1814, %v1926
    %1928 = vmatprep.mubr.f32.mxu0 0.0
    %1929 = vmatmul.mubr.f32.gmra.mxu0 %v1490
    %v1930 = vpop.f32.mrf.mxu0
    %v1931 = vadd.f32 %v1818, %v1930
    %v1932 = vpop.f32.mrf.mxu0
    %v1933 = vadd.f32 %v1820, %v1932
    %1934 = vmatprep.mubr.f32.mxu0 0.0
    %1935 = vmatmul.mubr.f32.gmra.mxu0 %v1493
    %v1936 = vpop.f32.mrf.mxu0
    %v1937 = vadd.f32 %v1824, %v1936
    %v1938 = vpop.f32.mrf.mxu0
    %v1939 = vadd.f32 %v1826, %v1938
    %1940 = vmatprep.mubr.f32.mxu0 0.0
    %1941 = vmatmul.mubr.f32.gmra.mxu0 %v1496
    %v1942 = vpop.f32.mrf.mxu0
    %v1943 = vadd.f32 %v1830, %v1942
    %v1944 = vpop.f32.mrf.mxu0
    %v1945 = vadd.f32 %v1832, %v1944
    %1946 = vmatprep.mubr.f32.mxu0 0.0
    %1947 = vmatmul.mubr.f32.gmra.mxu0 %v1499
    %v1948 = vpop.f32.mrf.mxu0
    %v1949 = vadd.f32 %v1836, %v1948
    %v1950 = vpop.f32.mrf.mxu0
    %v1951 = vadd.f32 %v1838, %v1950
    %1952 = vdwg.mxu0
    %1953 = vst [vmem:[#allocation7] sm:$0xff] %v1681
    %1954 = vst [vmem:[#allocation7 + $0x8] sm:$0xff] %v1683
    %1955 = vst [vmem:[#allocation7 + $0x10] sm:$0xff] %v1907
    %1956 = vst [vmem:[#allocation7 + $0x18] sm:$0xff] %v1909
    %1957 = vst [vmem:[#allocation7 + $0x20] sm:$0xff] %v1687
    %1958 = vst [vmem:[#allocation7 + $0x28] sm:$0xff] %v1689
    %1959 = vst [vmem:[#allocation7 + $0x30] sm:$0xff] %v1913
    %1960 = vst [vmem:[#allocation7 + $0x38] sm:$0xff] %v1915
    %1961 = vst [vmem:[#allocation7 + $0x40] sm:$0xff] %v1693
    %1962 = vst [vmem:[#allocation7 + $0x48] sm:$0xff] %v1695
    %1963 = vst [vmem:[#allocation7 + $0x50] sm:$0xff] %v1919
    %1964 = vst [vmem:[#allocation7 + $0x58] sm:$0xff] %v1921
    %1965 = vst [vmem:[#allocation7 + $0x60] sm:$0xff] %v1699
    %1966 = vst [vmem:[#allocation7 + $0x68] sm:$0xff] %v1701
    %1967 = vst [vmem:[#allocation7 + $0x70] sm:$0xff] %v1925
    %1968 = vst [vmem:[#allocation7 + $0x78] sm:$0xff] %v1927
    %1969 = vst [vmem:[#allocation7 + $0x80] sm:$0xff] %v1705
    %1970 = vst [vmem:[#allocation7 + $0x88] sm:$0xff] %v1707
    %1971 = vst [vmem:[#allocation7 + $0x90] sm:$0xff] %v1931
    %1972 = vst [vmem:[#allocation7 + $0x98] sm:$0xff] %v1933
    %1973 = vst [vmem:[#allocation7 + $0xa0] sm:$0xff] %v1711
    %1974 = vst [vmem:[#allocation7 + $0xa8] sm:$0xff] %v1713
    %1975 = vst [vmem:[#allocation7 + $0xb0] sm:$0xff] %v1937
    %1976 = vst [vmem:[#allocation7 + $0xb8] sm:$0xff] %v1939
    %1977 = vst [vmem:[#allocation7 + $0xc0] sm:$0xff] %v1717
    %1978 = vst [vmem:[#allocation7 + $0xc8] sm:$0xff] %v1719
    %1979 = vst [vmem:[#allocation7 + $0xd0] sm:$0xff] %v1943
    %1980 = vst [vmem:[#allocation7 + $0xd8] sm:$0xff] %v1945
    %1981 = vst [vmem:[#allocation7 + $0xe0] sm:$0xff] %v1723
    %1982 = vst [vmem:[#allocation7 + $0xe8] sm:$0xff] %v1725
    %1983 = vst [vmem:[#allocation7 + $0xf0] sm:$0xff] %v1949
    %1984 = vst [vmem:[#allocation7 + $0xf8] sm:$0xff] %v1951
    // Predicated region
    $region18: #{tpu_custom_call.1} parent=1 // pred_check
      _
    $region19: #{tpu_custom_call.1} parent=1 // pred_check_branch
      %1986 = sbr.rel (0) target = $region21
    $region20: #{tpu_custom_call.1} parent=1 // pred_region
      %s1988 = ssub.s32 4096, 4096
      %1989 = vsyncadd [#allocation6], %s1988
      %s1990 = sshll.u32 [#allocation7], 4
      %s1991 = int_to_ptr.vmem [resolvable:$true] %s1990
      %1996 = dma.vmem_to_hbm [thread:$0]  %s1991, 4096, %s3, [#allocation6], 512, 512, 32
    $region21: #{tpu_custom_call.1} parent=1 // pred_fallthru
      _
    // Predicated region
    $region22: #{tpu_custom_call.1} parent=1 // pred_check
      _
    $region23: #{tpu_custom_call.1} parent=1 // pred_check_branch
      %1998 = sbr.rel (0) target = $region25
    $region24: #{tpu_custom_call.1} parent=1 // pred_region
      %1999 = dma.done [#allocation6], 4096
    $region25: #{tpu_custom_call.1} parent=1 // pred_fallthru
      _
    %2000 = vsyncpa [#allocation5], 1
    %2001 = vsyncpa [#allocation6], 1

</llo_original>
